<compile_context>
chip_gen: v6e
topology: v6e:2x2x1
jax: 0.10.0
libtpu: 0.0.40
codegen_flags: <defaults>
</compile_context>

<pallas_src>
import functools

import jax
import jax.numpy as jnp
from jax.experimental import pallas as pl
from jax.experimental.pallas import tpu as pltpu


BN_EPS = 1e-5
EXPANSION = 4
_LANE = 128


# ---------------------------------------------------------------------------
# Small helpers / per-generation tuning
# ---------------------------------------------------------------------------
def _round_up(x, m):
    return ((x + m - 1) // m) * m


@functools.lru_cache(maxsize=None)
def _tpu_tuning():
    """(tm_max, vmem_limit_bytes) per TPU generation."""
    tm_max, vmem_limit = 512, 48 * 1024 * 1024          # safe on v7x (64 MiB VMEM)
    try:
        cap = getattr(pltpu.get_tpu_info(), "vmem_capacity_bytes", None)
        if cap is not None and cap >= 100 * 1024 * 1024:  # v5e / v6e: 128 MiB VMEM
            tm_max, vmem_limit = 1024, 96 * 1024 * 1024
    except Exception:
        pass
    return tm_max, vmem_limit


def _m_tiling(M, K, N, streams=1):
    """Padded M and M-tile for a full-K / full-N, weight-resident GEMM.

    `streams` = number of (TM, N)-sized tensors streamed per tile
    (output [+ residual] [+ preact]).  Shrinks TM if the double-buffered
    footprint would not fit the per-generation VMEM budget.
    """
    tm_max, vmem_limit = _tpu_tuning()
    budget = int(vmem_limit * 0.85)
    tm = tm_max
    while tm > 8:
        foot = (2 * tm * K * 2              # double-buffered bf16 x tile
                + K * N * 2                 # resident bf16 weight (single buffer)
                + streams * 2 * tm * N * 2  # out / res / preact tiles
                + N * 4)                    # bias
        if foot <= budget:
            break
        tm //= 2
    m8 = _round_up(M, 8)
    if m8 <= tm:
        return m8, m8                       # single tile
    return _round_up(m8, tm), tm


# ---------------------------------------------------------------------------
# Pallas kernels
# ---------------------------------------------------------------------------
def _gemm_bias_kernel(x_ref, w_ref, b_ref, o_ref, *, relu):
    """out = [relu](x @ w + bias); full K reduction in one MXU dot."""
    y = jnp.dot(x_ref[...], w_ref[...],
                preferred_element_type=jnp.float32) + b_ref[...]
    if relu:
        y = jnp.maximum(y, 0.0)
    o_ref[...] = y.astype(o_ref.dtype)


def _gemm_bias_res_kernel(x_ref, w_ref, b_ref, r_ref, *out_refs, with_preact):
    """pre = x @ w + bias + res ; out = relu(pre) [; emit pre iff with_preact]."""
    pre = (jnp.dot(x_ref[...], w_ref[...], preferred_element_type=jnp.float32)
           + b_ref[...] + r_ref[...].astype(jnp.float32))
    if with_preact:
        o_ref, p_ref = out_refs
        p_ref[...] = pre.astype(p_ref.dtype)
    else:
        (o_ref,) = out_refs
    o_ref[...] = jnp.maximum(pre, 0.0).astype(o_ref.dtype)


def _conv3x3_bn_relu_kernel(x_ref, w_ref, b_ref, o_ref, *, stride, Ho, Wo, Hs):
    """Fused 3x3 conv (padding=1, given stride) + folded BN bias + ReLU.

    x_ref holds one image: (1, s*s*Hs, Ws, Cp) -- spatially padded and
    space-to-depth'd by `stride`, so every tap is a contiguous static window.
    w_ref: (9, Cp, Co) bf16 (BN scale folded).  9 MXU dots, f32 accumulate.
    """
    s = stride
    Co = o_ref.shape[-1]
    acc = jnp.zeros((Ho * Wo, Co), jnp.float32)
    for dh in range(3):                      # statically unrolled: 9 taps
        for dw in range(3):
            plane = (dh % s) * s + (dw % s)
            r0 = plane * Hs + dh // s
            c0 = dw // s
            tap = x_ref[0, pl.ds(r0, Ho), pl.ds(c0, Wo), :]     # (Ho, Wo, Cp)
            acc = acc + jnp.dot(tap.reshape(Ho * Wo, tap.shape[-1]),
                                w_ref[dh * 3 + dw],
                                preferred_element_type=jnp.float32)
    y = jnp.maximum(acc + b_ref[...], 0.0)
    o_ref[...] = y.reshape(1, Ho, Wo, Co).astype(o_ref.dtype)


# ---------------------------------------------------------------------------
# Pallas wrappers
# ---------------------------------------------------------------------------
def gemm_bias(x2d, w, bias2d, *, relu, out_dtype=jnp.bfloat16):
    M, K = x2d.shape
    N = w.shape[1]
    assert K % _LANE == 0 and N % _LANE == 0
    M_pad, TM = _m_tiling(M, K, N, streams=1)
    if M_pad != M:
        x2d = jnp.pad(x2d, ((0, M_pad - M), (0, 0)))
    out = pl.pallas_call(
        functools.partial(_gemm_bias_kernel, relu=relu),
        out_shape=jax.ShapeDtypeStruct((M_pad, N), out_dtype),
        grid=(M_pad // TM,),
        in_specs=[
            pl.BlockSpec((TM, K), lambda i: (i, 0)),
            pl.BlockSpec((K, N), lambda i: (0, 0)),     # weight resident in VMEM
            pl.BlockSpec((1, N), lambda i: (0, 0)),
        ],
        out_specs=pl.BlockSpec((TM, N), lambda i: (i, 0)),
        compiler_params=pltpu.CompilerParams(
            dimension_semantics=("parallel",),
            vmem_limit_bytes=_tpu_tuning()[1]),
    )(x2d, w, bias2d)
    return out[:M] if M_pad != M else out


def gemm_bias_res_relu(x2d, w, bias2d, res, *, with_preact,
                       out_dtype=jnp.bfloat16):
    M, K = x2d.shape
    N = w.shape[1]
    assert K % _LANE == 0 and N % _LANE == 0 and res.shape == (M, N)
    M_pad, TM = _m_tiling(M, K, N, streams=3 if with_preact else 2)
    if M_pad != M:
        x2d = jnp.pad(x2d, ((0, M_pad - M), (0, 0)))
        res = jnp.pad(res, ((0, M_pad - M), (0, 0)))
    if with_preact:
        out_shape = (jax.ShapeDtypeStruct((M_pad, N), out_dtype),
                     jax.ShapeDtypeStruct((M_pad, N), out_dtype))
        out_specs = (pl.BlockSpec((TM, N), lambda i: (i, 0)),
                     pl.BlockSpec((TM, N), lambda i: (i, 0)))
    else:
        out_shape = jax.ShapeDtypeStruct((M_pad, N), out_dtype)
        out_specs = pl.BlockSpec((TM, N), lambda i: (i, 0))
    out = pl.pallas_call(
        functools.partial(_gemm_bias_res_kernel, with_preact=with_preact),
        out_shape=out_shape,
        grid=(M_pad // TM,),
        in_specs=[
            pl.BlockSpec((TM, K), lambda i: (i, 0)),
            pl.BlockSpec((K, N), lambda i: (0, 0)),     # weight resident in VMEM
            pl.BlockSpec((1, N), lambda i: (0, 0)),
            pl.BlockSpec((TM, N), lambda i: (i, 0)),
        ],
        out_specs=out_specs,
        compiler_params=pltpu.CompilerParams(
            dimension_semantics=("parallel",),
            vmem_limit_bytes=_tpu_tuning()[1]),
    )(x2d, w, bias2d, res)
    if with_preact:
        o, p = out
        return (o[:M], p[:M]) if M_pad != M else (o, p)
    return out[:M] if M_pad != M else out


def conv3x3_bn_relu(x_planes, w9, bias2d, *, stride, Ho, Wo, Hs,
                    out_dtype=jnp.bfloat16):
    """x_planes: (N, s*s*Hs, Ws, Cp) bf16; w9: (9, Cp, Co); bias2d: (1, Co)."""
    N, S2Hs, Ws, Cp = x_planes.shape
    Co = w9.shape[-1]
    assert Cp % _LANE == 0 and Co % _LANE == 0
    kernel = functools.partial(_conv3x3_bn_relu_kernel,
                               stride=stride, Ho=Ho, Wo=Wo, Hs=Hs)
    return pl.pallas_call(
        kernel,
        out_shape=jax.ShapeDtypeStruct((N, Ho, Wo, Co), out_dtype),
        grid=(N,),
        in_specs=[
            pl.BlockSpec((1, S2Hs, Ws, Cp), lambda n: (n, 0, 0, 0)),
            pl.BlockSpec((9, Cp, Co), lambda n: (0, 0, 0)),   # weight resident
            pl.BlockSpec((1, Co), lambda n: (0, 0)),
        ],
        out_specs=pl.BlockSpec((1, Ho, Wo, Co), lambda n: (n, 0, 0, 0)),
        compiler_params=pltpu.CompilerParams(
            dimension_semantics=("parallel",),
            vmem_limit_bytes=_tpu_tuning()[1]),
    )(x_planes, w9, bias2d)


# ---------------------------------------------------------------------------
# One-time parameter preparation (BN fold, channel pad, bf16 cast)
# ---------------------------------------------------------------------------
def fold_bn(p):
    scale = p["gamma"] / jnp.sqrt(p["var"] + BN_EPS)
    shift = p["beta"] - p["mean"] * scale
    return scale, shift


def _prep_w_1x1(w, bn, cin_p, cout_p):
    scale, bias = fold_bn(bn)
    o, i = w.shape[0], w.shape[1]
    wm = w.reshape(o, i).T * scale[None, :]                         # (I, O)
    wm = jnp.pad(wm, ((0, cin_p - i), (0, cout_p - o)))
    bias = jnp.pad(bias, (0, cout_p - o))
    return wm.astype(jnp.bfloat16), bias[None, :].astype(jnp.float32)


def _prep_w_3x3(w, bn, cin_p, cout_p):
    scale, bias = fold_bn(bn)
    o, i = w.shape[0], w.shape[1]
    wm = jnp.transpose(w, (2, 3, 1, 0)) * scale[None, None, None, :]  # (3,3,I,O)
    wm = jnp.pad(wm, ((0, 0), (0, 0), (0, cin_p - i), (0, cout_p - o)))
    wm = wm.reshape(9, cin_p, cout_p)
    bias = jnp.pad(bias, (0, cout_p - o))
    return wm.astype(jnp.bfloat16), bias[None, :].astype(jnp.float32)


def prepare_params(params):
    """Fold BN into weights, pad channels to lane multiples, cast to bf16.
    Run once (inference constants); the forward pass does no weight prep."""
    planes, in_planes = params["conv1_w"].shape[0], params["conv1_w"].shape[1]
    out_planes = params["conv3_w"].shape[0]
    cin_p = _round_up(in_planes, _LANE)
    p_p = _round_up(planes, _LANE)
    op_p = _round_up(out_planes, _LANE)

    w1, b1 = _prep_w_1x1(params["conv1_w"], params["bn1"], cin_p, p_p)
    w2, b2 = _prep_w_3x3(params["conv2_w"], params["bn2"], p_p, p_p)
    w3, b3 = _prep_w_1x1(params["conv3_w"], params["bn3"], p_p, op_p)
    prep = dict(w1=w1, b1=b1, w2=w2, b2=b2, w3=w3, b3=b3)
    if "sc_conv_w" in params:
        ws, bs = _prep_w_1x1(params["sc_conv_w"], params["sc_bn"], cin_p, op_p)
        prep["ws"], prep["bs"] = ws, bs
    return prep


# ---------------------------------------------------------------------------
# Forward pass
# ---------------------------------------------------------------------------
def _pad_space_to_depth(x_nhwc, stride):
    """Zero-pad by 1 (3x3 'same' conv) and space-to-depth by `stride`, so the
    conv2 kernel only needs contiguous static tap windows (no strided loads)."""
    N, H, W, C = x_nhwc.shape
    s = stride
    Hp = _round_up(H + 2, s)
    Wp = _round_up(W + 2, s)
    xp = jnp.pad(x_nhwc, ((0, 0), (1, Hp - H - 1), (1, Wp - W - 1), (0, 0)))
    Hs, Ws = Hp // s, Wp // s
    if s == 1:
        return xp, Hs, Ws
    xr = xp.reshape(N, Hs, s, Ws, s, C)
    xr = jnp.transpose(xr, (0, 2, 4, 1, 3, 5))          # (N, s, s, Hs, Ws, C)
    return xr.reshape(N, s * s * Hs, Ws, C), Hs, Ws


@functools.partial(jax.jit, static_argnames=("stride", "is_last", "out_planes"))
def bottleneck_forward(x_nchw, prep, *, stride, is_last, out_planes):
    x = jnp.transpose(x_nchw, (0, 2, 3, 1)).astype(jnp.float32)     # NHWC
    N, H, W, Cin = x.shape
    Cin_p = prep["w1"].shape[0]
    P_p = prep["w1"].shape[1]
    Op_p = prep["w3"].shape[1]
    Ho = (H - 1) // stride + 1
    Wo = (W - 1) // stride + 1
    M1, M2 = N * H * W, N * Ho * Wo

    # single channel-pad + bf16 cast of the input activation
    if Cin_p != Cin:
        x_bf = jnp.pad(x, ((0, 0), (0, 0), (0, 0), (0, Cin_p - Cin))).astype(jnp.bfloat16)
    else:
        x_bf = x.astype(jnp.bfloat16)

    # ---- conv1 (1x1) + bn1 + relu ----------------------------------------
    out1 = gemm_bias(x_bf.reshape(M1, Cin_p), prep["w1"], prep["b1"], relu=True)
    out1 = out1.reshape(N, H, W, P_p)

    # ---- conv2 (3x3, stride, pad=1) + bn2 + relu  (fused, no HBM im2col) --
    x_planes, Hs, _ = _pad_space_to_depth(out1, stride)
    out2 = conv3x3_bn_relu(x_planes, prep["w2"], prep["b2"],
                           stride=stride, Ho=Ho, Wo=Wo, Hs=Hs)
    x3 = out2.reshape(M2, P_p)

    # ---- shortcut branch ---------------------------------------------------
    if "ws" in prep:
        xs = x_bf[:, ::stride, ::stride, :].reshape(M2, Cin_p)
        res = gemm_bias(xs, prep["ws"], prep["bs"], relu=False)      # bf16
    else:
        # identity: stride == 1 and Cin == out_planes  =>  M1 == M2
        res = x.reshape(M2, Cin)                                     # keep f32
        if Op_p != Cin:
            res = jnp.pad(res, ((0, 0), (0, Op_p - Cin)))

    # ---- conv3 (1x1) + bn3 + residual add (+relu) --------------------------
    outs = gemm_bias_res_relu(x3, prep["w3"], prep["b3"], res, with_preact=is_last)

    def unflatten(a):
        a = a[:, :out_planes].reshape(N, Ho, Wo, out_planes)
        return jnp.transpose(a, (0, 3, 1, 2)).astype(jnp.float32)

    if is_last:
        out_f, pre_f = outs
        return unflatten(out_f), unflatten(pre_f)
    return unflatten(outs)


# ---------------------------------------------------------------------------
# Parameter init + pure-JAX reference (verification only)
# ---------------------------------------------------------------------------
def init_params(key, in_planes, planes, stride, expansion=EXPANSION):
    ks = jax.random.split(key, 8)

    def conv_w(k, o, i, kh, kw):
        return 0.1 * jax.random.normal(k, (o, i, kh, kw), dtype=jnp.float32)

    def bn_p(k, c):
        k1, k2, k3, k4 = jax.random.split(k, 4)
        return dict(
            gamma=1.0 + 0.1 * jax.random.normal(k1, (c,), jnp.float32),
            beta=0.1 * jax.random.normal(k2, (c,), jnp.float32),
            mean=0.1 * jax.random.normal(k3, (c,), jnp.float32),
            var=jax.random.uniform(k4, (c,), jnp.float32, minval=0.5, maxval=1.5),
        )

    p = dict(
        conv1_w=conv_w(ks[0], planes, in_planes, 1, 1),
        bn1=bn_p(ks[1], planes),
        conv2_w=conv_w(ks[2], planes, planes, 3, 3),
        bn2=bn_p(ks[3], planes),
        conv3_w=conv_w(ks[4], expansion * planes, planes, 1, 1),
        bn3=bn_p(ks[5], expansion * planes),
    )
    if stride != 1 or in_planes != expansion * planes:
        p["sc_conv_w"] = conv_w(ks[6], expansion * planes, in_planes, 1, 1)
        p["sc_bn"] = bn_p(ks[7], expansion * planes)
    return p


def ref_forward(x, params, stride):
    def conv(x, w, stride=1, pad=0):
        return jax.lax.conv_general_dilated(
            x, w, (stride, stride), [(pad, pad), (pad, pad)],
            dimension_numbers=("NCHW", "OIHW", "NCHW"))

    def bn(x, p):
        s, b = fold_bn(p)
        return x * s[None, :, None, None] + b[None, :, None, None]

    out = jax.nn.relu(bn(conv(x, params["conv1_w"]), params["bn1"]))
    out = jax.nn.relu(bn(conv(out, params["conv2_w"], stride=stride, pad=1),
                         params["bn2"]))
    out = bn(conv(out, params["conv3_w"]), params["bn3"])
    if "sc_conv_w" in params:
        sc = bn(conv(x, params["sc_conv_w"], stride=stride), params["sc_bn"])
    else:
        sc = x
    pre = out + sc
    return jax.nn.relu(pre), pre


if __name__ == "__main__":
    key = jax.random.PRNGKey(0)
    kx, kp, kx2, kp2 = jax.random.split(key, 4)

    # Config 1: projection shortcut, stride=2, is_last=True.
    in_planes, planes, stride = 8, 4, 2
    N, H, W = 2, 8, 8
    x = jax.random.normal(kx, (N, in_planes, H, W), dtype=jnp.float32)
    params = init_params(kp, in_planes, planes, stride)
    prep = prepare_params(params)

    out, preact = bottleneck_forward(x, prep, stride=stride, is_last=True,
                                     out_planes=EXPANSION * planes)
    out = jax.block_until_ready(out)
    preact = jax.block_until_ready(preact)

    ref_out, ref_pre = ref_forward(x, params, stride)
    assert out.shape == (N, EXPANSION * planes, H // stride, W // stride), out.shape
    # bf16 MXU operands / bf16 stores (f32 accumulate) -> loose tolerance vs f32 ref
    assert jnp.allclose(out, ref_out, rtol=3e-2, atol=3e-2)
    assert jnp.allclose(preact, ref_pre, rtol=3e-2, atol=3e-2)

    # Config 2: identity shortcut (stride=1, in_planes == 4*planes), is_last=False.
    in_planes2, planes2, stride2 = 16, 4, 1
    x2 = jax.random.normal(kx2, (N, in_planes2, H, W), dtype=jnp.float32)
    params2 = init_params(kp2, in_planes2, planes2, stride2)
    prep2 = prepare_params(params2)
    out2 = jax.block_until_ready(
        bottleneck_forward(x2, prep2, stride=stride2, is_last=False,
                           out_planes=EXPANSION * planes2))
    ref_out2, _ = ref_forward(x2, params2, stride2)
    assert out2.shape == (N, EXPANSION * planes2, H, W), out2.shape
    assert jnp.allclose(out2, ref_out2, rtol=3e-2, atol=3e-2)

    print("KERNEL_OK")
</pallas_src>

<mosaic_0001>
module attributes {stable_mosaic.version = 11 : i64} {
  func.func @_gemm_bias_kernel(%arg0: i32, %arg1: memref<32x128xbf16, #tpu.memory_space<vmem>>, %arg2: memref<128x128xbf16, #tpu.memory_space<vmem>>, %arg3: memref<1x128xf32, #tpu.memory_space<vmem>>, %arg4: memref<32x128xbf16, #tpu.memory_space<vmem>>) attributes {dimension_semantics = [#tpu.dimension_semantics<parallel>], iteration_bounds = array<i64: 1>, scalar_prefetch = 0 : i64, scratch_operands = 0 : i64, tpu.core_type = #tpu.core_type<tc>, window_params = [{transform_indices = @transform_0, window_bounds = array<i64: 32, 128>}, {pipeline_mode = #tpu.pipeline_mode<synchronous>, transform_indices = @transform_1, window_bounds = array<i64: 128, 128>}, {pipeline_mode = #tpu.pipeline_mode<synchronous>, transform_indices = @transform_2, window_bounds = array<i64: 1, 128>}, {transform_indices = @transform_3, window_bounds = array<i64: 32, 128>}]} {
    %c0 = arith.constant 0 : index
    %c0_0 = arith.constant 0 : index
    %0 = vector.load %arg1[%c0, %c0_0] : memref<32x128xbf16, #tpu.memory_space<vmem>>, vector<32x128xbf16>
    %c0_1 = arith.constant 0 : index
    %c0_2 = arith.constant 0 : index
    %1 = vector.load %arg2[%c0_1, %c0_2] : memref<128x128xbf16, #tpu.memory_space<vmem>>, vector<128x128xbf16>
    %cst = arith.constant dense<0.000000e+00> : vector<32x128xf32>
    %2 = tpu.matmul %0, %1, %cst {dimension_numbers = #tpu.dot_dimension_numbers<[1], [0], [0], [1], [0, 0, 1, 1], [], []>} : vector<32x128xbf16>, vector<128x128xbf16>, vector<32x128xf32> -> vector<32x128xf32>
    %c0_3 = arith.constant 0 : index
    %c0_4 = arith.constant 0 : index
    %3 = vector.load %arg3[%c0_3, %c0_4] : memref<1x128xf32, #tpu.memory_space<vmem>>, vector<1x128xf32>
    %4 = vector.broadcast %3 : vector<1x128xf32> to vector<32x128xf32>
    %5 = arith.addf %2, %4 : vector<32x128xf32>
    %6 = arith.truncf %5 : vector<32x128xf32> to vector<32x128xbf16>
    %c0_5 = arith.constant 0 : index
    %c0_6 = arith.constant 0 : index
    %7 = vector.load %arg4[%c0_5, %c0_6] : memref<32x128xbf16, #tpu.memory_space<vmem>>, vector<32x128xbf16>
    tpu.vector_store %arg4[%c0_5, %c0_6], %6 {strides = array<i32>} : memref<32x128xbf16, #tpu.memory_space<vmem>>, vector<32x128xbf16>,
    return
  }
  func.func @transform_0(%arg0: i32) -> (i32, i32) {
    %c0_i32 = arith.constant 0 : i32
    %c0_i32_0 = arith.constant 0 : i32
    return %arg0, %c0_i32 : i32, i32
  }
  func.func @transform_1(%arg0: i32) -> (i32, i32) {
    %c0_i32 = arith.constant 0 : i32
    %c0_i32_0 = arith.constant 0 : i32
    %c0_i32_1 = arith.constant 0 : i32
    return %c0_i32, %c0_i32_0 : i32, i32
  }
  func.func @transform_2(%arg0: i32) -> (i32, i32) {
    %c0_i32 = arith.constant 0 : i32
    %c0_i32_0 = arith.constant 0 : i32
    %c0_i32_1 = arith.constant 0 : i32
    return %c0_i32, %c0_i32_0 : i32, i32
  }
  func.func @transform_3(%arg0: i32) -> (i32, i32) {
    %c0_i32 = arith.constant 0 : i32
    %c0_i32_0 = arith.constant 0 : i32
    return %arg0, %c0_i32 : i32, i32
  }
}

module attributes {stable_mosaic.version = 11 : i64} {
  func.func @_gemm_bias_kernel(%arg0: i32, %arg1: memref<128x128xbf16, #tpu.memory_space<vmem>>, %arg2: memref<128x128xbf16, #tpu.memory_space<vmem>>, %arg3: memref<1x128xf32, #tpu.memory_space<vmem>>, %arg4: memref<128x128xbf16, #tpu.memory_space<vmem>>) attributes {dimension_semantics = [#tpu.dimension_semantics<parallel>], iteration_bounds = array<i64: 1>, scalar_prefetch = 0 : i64, scratch_operands = 0 : i64, tpu.core_type = #tpu.core_type<tc>, window_params = [{transform_indices = @transform_0, window_bounds = array<i64: 128, 128>}, {pipeline_mode = #tpu.pipeline_mode<synchronous>, transform_indices = @transform_1, window_bounds = array<i64: 128, 128>}, {pipeline_mode = #tpu.pipeline_mode<synchronous>, transform_indices = @transform_2, window_bounds = array<i64: 1, 128>}, {transform_indices = @transform_3, window_bounds = array<i64: 128, 128>}]} {
    %c0 = arith.constant 0 : index
    %c0_0 = arith.constant 0 : index
    %0 = vector.load %arg1[%c0, %c0_0] : memref<128x128xbf16, #tpu.memory_space<vmem>>, vector<128x128xbf16>
    %c0_1 = arith.constant 0 : index
    %c0_2 = arith.constant 0 : index
    %1 = vector.load %arg2[%c0_1, %c0_2] : memref<128x128xbf16, #tpu.memory_space<vmem>>, vector<128x128xbf16>
    %cst = arith.constant dense<0.000000e+00> : vector<128x128xf32>
    %2 = tpu.matmul %0, %1, %cst {dimension_numbers = #tpu.dot_dimension_numbers<[1], [0], [0], [1], [0, 0, 1, 1], [], []>} : vector<128x128xbf16>, vector<128x128xbf16>, vector<128x128xf32> -> vector<128x128xf32>
    %c0_3 = arith.constant 0 : index
    %c0_4 = arith.constant 0 : index
    %3 = vector.load %arg3[%c0_3, %c0_4] : memref<1x128xf32, #tpu.memory_space<vmem>>, vector<1x128xf32>
    %4 = vector.broadcast %3 : vector<1x128xf32> to vector<128x128xf32>
    %5 = arith.addf %2, %4 : vector<128x128xf32>
    %cst_5 = arith.constant 0.000000e+00 : f32
    %6 = vector.broadcast %cst_5 : f32 to vector<128x128xf32>
    %7 = arith.maximumf %5, %6 : vector<128x128xf32>
    %8 = arith.truncf %7 : vector<128x128xf32> to vector<128x128xbf16>
    %c0_6 = arith.constant 0 : index
    %c0_7 = arith.constant 0 : index
    %9 = vector.load %arg4[%c0_6, %c0_7] : memref<128x128xbf16, #tpu.memory_space<vmem>>, vector<128x128xbf16>
    tpu.vector_store %arg4[%c0_6, %c0_7], %8 {strides = array<i32>} : memref<128x128xbf16, #tpu.memory_space<vmem>>, vector<128x128xbf16>,
    return
  }
  func.func @transform_0(%arg0: i32) -> (i32, i32) {
    %c0_i32 = arith.constant 0 : i32
    %c0_i32_0 = arith.constant 0 : i32
    return %arg0, %c0_i32 : i32, i32
  }
  func.func @transform_1(%arg0: i32) -> (i32, i32) {
    %c0_i32 = arith.constant 0 : i32
    %c0_i32_0 = arith.constant 0 : i32
    %c0_i32_1 = arith.constant 0 : i32
    return %c0_i32, %c0_i32_0 : i32, i32
  }
  func.func @transform_2(%arg0: i32) -> (i32, i32) {
    %c0_i32 = arith.constant 0 : i32
    %c0_i32_0 = arith.constant 0 : i32
    %c0_i32_1 = arith.constant 0 : i32
    return %c0_i32, %c0_i32_0 : i32, i32
  }
  func.func @transform_3(%arg0: i32) -> (i32, i32) {
    %c0_i32 = arith.constant 0 : i32
    %c0_i32_0 = arith.constant 0 : i32
    return %arg0, %c0_i32 : i32, i32
  }
}

module attributes {stable_mosaic.version = 11 : i64} {
  func.func @_gemm_bias_res_kernel(%arg0: i32, %arg1: memref<32x128xbf16, #tpu.memory_space<vmem>>, %arg2: memref<128x128xbf16, #tpu.memory_space<vmem>>, %arg3: memref<1x128xf32, #tpu.memory_space<vmem>>, %arg4: memref<32x128xbf16, #tpu.memory_space<vmem>>, %arg5: memref<32x128xbf16, #tpu.memory_space<vmem>>, %arg6: memref<32x128xbf16, #tpu.memory_space<vmem>>) attributes {dimension_semantics = [#tpu.dimension_semantics<parallel>], iteration_bounds = array<i64: 1>, scalar_prefetch = 0 : i64, scratch_operands = 0 : i64, tpu.core_type = #tpu.core_type<tc>, window_params = [{transform_indices = @transform_0, window_bounds = array<i64: 32, 128>}, {pipeline_mode = #tpu.pipeline_mode<synchronous>, transform_indices = @transform_1, window_bounds = array<i64: 128, 128>}, {pipeline_mode = #tpu.pipeline_mode<synchronous>, transform_indices = @transform_2, window_bounds = array<i64: 1, 128>}, {transform_indices = @transform_3, window_bounds = array<i64: 32, 128>}, {transform_indices = @transform_4, window_bounds = array<i64: 32, 128>}, {transform_indices = @transform_5, window_bounds = array<i64: 32, 128>}]} {
    %c0 = arith.constant 0 : index
    %c0_0 = arith.constant 0 : index
    %0 = vector.load %arg1[%c0, %c0_0] : memref<32x128xbf16, #tpu.memory_space<vmem>>, vector<32x128xbf16>
    %c0_1 = arith.constant 0 : index
    %c0_2 = arith.constant 0 : index
    %1 = vector.load %arg2[%c0_1, %c0_2] : memref<128x128xbf16, #tpu.memory_space<vmem>>, vector<128x128xbf16>
    %cst = arith.constant dense<0.000000e+00> : vector<32x128xf32>
    %2 = tpu.matmul %0, %1, %cst {dimension_numbers = #tpu.dot_dimension_numbers<[1], [0], [0], [1], [0, 0, 1, 1], [], []>} : vector<32x128xbf16>, vector<128x128xbf16>, vector<32x128xf32> -> vector<32x128xf32>
    %c0_3 = arith.constant 0 : index
    %c0_4 = arith.constant 0 : index
    %3 = vector.load %arg3[%c0_3, %c0_4] : memref<1x128xf32, #tpu.memory_space<vmem>>, vector<1x128xf32>
    %4 = vector.broadcast %3 : vector<1x128xf32> to vector<32x128xf32>
    %5 = arith.addf %2, %4 : vector<32x128xf32>
    %c0_5 = arith.constant 0 : index
    %c0_6 = arith.constant 0 : index
    %6 = vector.load %arg4[%c0_5, %c0_6] : memref<32x128xbf16, #tpu.memory_space<vmem>>, vector<32x128xbf16>
    %7 = arith.extf %6 : vector<32x128xbf16> to vector<32x128xf32>
    %8 = arith.addf %5, %7 : vector<32x128xf32>
    %9 = arith.truncf %8 : vector<32x128xf32> to vector<32x128xbf16>
    %c0_7 = arith.constant 0 : index
    %c0_8 = arith.constant 0 : index
    %10 = vector.load %arg6[%c0_7, %c0_8] : memref<32x128xbf16, #tpu.memory_space<vmem>>, vector<32x128xbf16>
    tpu.vector_store %arg6[%c0_7, %c0_8], %9 {strides = array<i32>} : memref<32x128xbf16, #tpu.memory_space<vmem>>, vector<32x128xbf16>,
    %cst_9 = arith.constant 0.000000e+00 : f32
    %11 = vector.broadcast %cst_9 : f32 to vector<32x128xf32>
    %12 = arith.maximumf %8, %11 : vector<32x128xf32>
    %13 = arith.truncf %12 : vector<32x128xf32> to vector<32x128xbf16>
    %c0_10 = arith.constant 0 : index
    %c0_11 = arith.constant 0 : index
    %14 = vector.load %arg5[%c0_10, %c0_11] : memref<32x128xbf16, #tpu.memory_space<vmem>>, vector<32x128xbf16>
    tpu.vector_store %arg5[%c0_10, %c0_11], %13 {strides = array<i32>} : memref<32x128xbf16, #tpu.memory_space<vmem>>, vector<32x128xbf16>,
    return
  }
  func.func @transform_0(%arg0: i32) -> (i32, i32) {
    %c0_i32 = arith.constant 0 : i32
    %c0_i32_0 = arith.constant 0 : i32
    return %arg0, %c0_i32 : i32, i32
  }
  func.func @transform_1(%arg0: i32) -> (i32, i32) {
    %c0_i32 = arith.constant 0 : i32
    %c0_i32_0 = arith.constant 0 : i32
    %c0_i32_1 = arith.constant 0 : i32
    return %c0_i32, %c0_i32_0 : i32, i32
  }
  func.func @transform_2(%arg0: i32) -> (i32, i32) {
    %c0_i32 = arith.constant 0 : i32
    %c0_i32_0 = arith.constant 0 : i32
    %c0_i32_1 = arith.constant 0 : i32
    return %c0_i32, %c0_i32_0 : i32, i32
  }
  func.func @transform_3(%arg0: i32) -> (i32, i32) {
    %c0_i32 = arith.constant 0 : i32
    %c0_i32_0 = arith.constant 0 : i32
    return %arg0, %c0_i32 : i32, i32
  }
  func.func @transform_4(%arg0: i32) -> (i32, i32) {
    %c0_i32 = arith.constant 0 : i32
    %c0_i32_0 = arith.constant 0 : i32
    return %arg0, %c0_i32 : i32, i32
  }
  func.func @transform_5(%arg0: i32) -> (i32, i32) {
    %c0_i32 = arith.constant 0 : i32
    %c0_i32_0 = arith.constant 0 : i32
    return %arg0, %c0_i32 : i32, i32
  }
}

module attributes {stable_mosaic.version = 11 : i64} {
  func.func @_conv3x3_bn_relu_kernel(%arg0: i32, %arg1: memref<1x20x5x128xbf16, #tpu.memory_space<vmem>>, %arg2: memref<9x128x128xbf16, #tpu.memory_space<vmem>>, %arg3: memref<1x128xf32, #tpu.memory_space<vmem>>, %arg4: memref<1x4x4x128xbf16, #tpu.memory_space<vmem>>) attributes {dimension_semantics = [#tpu.dimension_semantics<parallel>], iteration_bounds = array<i64: 2>, scalar_prefetch = 0 : i64, scratch_operands = 0 : i64, tpu.core_type = #tpu.core_type<tc>, window_params = [{transform_indices = @transform_0, window_bounds = array<i64: 1, 20, 5, 128>}, {pipeline_mode = #tpu.pipeline_mode<synchronous>, transform_indices = @transform_1, window_bounds = array<i64: 9, 128, 128>}, {pipeline_mode = #tpu.pipeline_mode<synchronous>, transform_indices = @transform_2, window_bounds = array<i64: 1, 128>}, {transform_indices = @transform_3, window_bounds = array<i64: 1, 4, 4, 128>}]} {
    %cst = arith.constant 0.000000e+00 : f32
    %0 = vector.broadcast %cst : f32 to vector<16x128xf32>
    %c0 = arith.constant 0 : index
    %c0_0 = arith.constant 0 : index
    %c0_1 = arith.constant 0 : index
    %c0_2 = arith.constant 0 : index
    %1 = vector.load %arg1[%c0, %c0_0, %c0_1, %c0_2] : memref<1x20x5x128xbf16, #tpu.memory_space<vmem>>, vector<1x4x4x128xbf16>
    %2 = vector.shape_cast %1 : vector<1x4x4x128xbf16> to vector<4x4x128xbf16>
    %3 = vector.shape_cast %2 : vector<4x4x128xbf16> to vector<16x128xbf16>
    %c0_3 = arith.constant 0 : index
    %c0_4 = arith.constant 0 : index
    %c0_5 = arith.constant 0 : index
    %4 = vector.load %arg2[%c0_3, %c0_4, %c0_5] : memref<9x128x128xbf16, #tpu.memory_space<vmem>>, vector<1x128x128xbf16>
    %5 = vector.shape_cast %4 : vector<1x128x128xbf16> to vector<128x128xbf16>
    %cst_6 = arith.constant dense<0.000000e+00> : vector<16x128xf32>
    %6 = tpu.matmul %3, %5, %cst_6 {dimension_numbers = #tpu.dot_dimension_numbers<[1], [0], [0], [1], [0, 0, 1, 1], [], []>} : vector<16x128xbf16>, vector<128x128xbf16>, vector<16x128xf32> -> vector<16x128xf32>
    %7 = arith.addf %0, %6 : vector<16x128xf32>
    %c0_7 = arith.constant 0 : index
    %c5 = arith.constant 5 : index
    %c0_8 = arith.constant 0 : index
    %c0_9 = arith.constant 0 : index
    %8 = vector.load %arg1[%c0_7, %c5, %c0_8, %c0_9] : memref<1x20x5x128xbf16, #tpu.memory_space<vmem>>, vector<1x4x4x128xbf16>
    %9 = vector.shape_cast %8 : vector<1x4x4x128xbf16> to vector<4x4x128xbf16>
    %10 = vector.shape_cast %9 : vector<4x4x128xbf16> to vector<16x128xbf16>
    %c1 = arith.constant 1 : index
    %c0_10 = arith.constant 0 : index
    %c0_11 = arith.constant 0 : index
    %11 = vector.load %arg2[%c1, %c0_10, %c0_11] : memref<9x128x128xbf16, #tpu.memory_space<vmem>>, vector<1x128x128xbf16>
    %12 = vector.shape_cast %11 : vector<1x128x128xbf16> to vector<128x128xbf16>
    %cst_12 = arith.constant dense<0.000000e+00> : vector<16x128xf32>
    %13 = tpu.matmul %10, %12, %cst_12 {dimension_numbers = #tpu.dot_dimension_numbers<[1], [0], [0], [1], [0, 0, 1, 1], [], []>} : vector<16x128xbf16>, vector<128x128xbf16>, vector<16x128xf32> -> vector<16x128xf32>
    %14 = arith.addf %7, %13 : vector<16x128xf32>
    %c0_13 = arith.constant 0 : index
    %c0_14 = arith.constant 0 : index
    %c1_15 = arith.constant 1 : index
    %c0_16 = arith.constant 0 : index
    %15 = vector.load %arg1[%c0_13, %c0_14, %c1_15, %c0_16] : memref<1x20x5x128xbf16, #tpu.memory_space<vmem>>, vector<1x4x4x128xbf16>
    %16 = vector.shape_cast %15 : vector<1x4x4x128xbf16> to vector<4x4x128xbf16>
    %17 = vector.shape_cast %16 : vector<4x4x128xbf16> to vector<16x128xbf16>
    %c2 = arith.constant 2 : index
    %c0_17 = arith.constant 0 : index
    %c0_18 = arith.constant 0 : index
    %18 = vector.load %arg2[%c2, %c0_17, %c0_18] : memref<9x128x128xbf16, #tpu.memory_space<vmem>>, vector<1x128x128xbf16>
    %19 = vector.shape_cast %18 : vector<1x128x128xbf16> to vector<128x128xbf16>
    %cst_19 = arith.constant dense<0.000000e+00> : vector<16x128xf32>
    %20 = tpu.matmul %17, %19, %cst_19 {dimension_numbers = #tpu.dot_dimension_numbers<[1], [0], [0], [1], [0, 0, 1, 1], [], []>} : vector<16x128xbf16>, vector<128x128xbf16>, vector<16x128xf32> -> vector<16x128xf32>
    %21 = arith.addf %14, %20 : vector<16x128xf32>
    %c0_20 = arith.constant 0 : index
    %c10 = arith.constant 10 : index
    %c0_21 = arith.constant 0 : index
    %c0_22 = arith.constant 0 : index
    %22 = vector.load %arg1[%c0_20, %c10, %c0_21, %c0_22] : memref<1x20x5x128xbf16, #tpu.memory_space<vmem>>, vector<1x4x4x128xbf16>
    %23 = vector.shape_cast %22 : vector<1x4x4x128xbf16> to vector<4x4x128xbf16>
    %24 = vector.shape_cast %23 : vector<4x4x128xbf16> to vector<16x128xbf16>
    %c3 = arith.constant 3 : index
    %c0_23 = arith.constant 0 : index
    %c0_24 = arith.constant 0 : index
    %25 = vector.load %arg2[%c3, %c0_23, %c0_24] : memref<9x128x128xbf16, #tpu.memory_space<vmem>>, vector<1x128x128xbf16>
    %26 = vector.shape_cast %25 : vector<1x128x128xbf16> to vector<128x128xbf16>
    %cst_25 = arith.constant dense<0.000000e+00> : vector<16x128xf32>
    %27 = tpu.matmul %24, %26, %cst_25 {dimension_numbers = #tpu.dot_dimension_numbers<[1], [0], [0], [1], [0, 0, 1, 1], [], []>} : vector<16x128xbf16>, vector<128x128xbf16>, vector<16x128xf32> -> vector<16x128xf32>
    %28 = arith.addf %21, %27 : vector<16x128xf32>
    %c0_26 = arith.constant 0 : index
    %c15 = arith.constant 15 : index
    %c0_27 = arith.constant 0 : index
    %c0_28 = arith.constant 0 : index
    %29 = vector.load %arg1[%c0_26, %c15, %c0_27, %c0_28] : memref<1x20x5x128xbf16, #tpu.memory_space<vmem>>, vector<1x4x4x128xbf16>
    %30 = vector.shape_cast %29 : vector<1x4x4x128xbf16> to vector<4x4x128xbf16>
    %31 = vector.shape_cast %30 : vector<4x4x128xbf16> to vector<16x128xbf16>
    %c4 = arith.constant 4 : index
    %c0_29 = arith.constant 0 : index
    %c0_30 = arith.constant 0 : index
    %32 = vector.load %arg2[%c4, %c0_29, %c0_30] : memref<9x128x128xbf16, #tpu.memory_space<vmem>>, vector<1x128x128xbf16>
    %33 = vector.shape_cast %32 : vector<1x128x128xbf16> to vector<128x128xbf16>
    %cst_31 = arith.constant dense<0.000000e+00> : vector<16x128xf32>
    %34 = tpu.matmul %31, %33, %cst_31 {dimension_numbers = #tpu.dot_dimension_numbers<[1], [0], [0], [1], [0, 0, 1, 1], [], []>} : vector<16x128xbf16>, vector<128x128xbf16>, vector<16x128xf32> -> vector<16x128xf32>
    %35 = arith.addf %28, %34 : vector<16x128xf32>
    %c0_32 = arith.constant 0 : index
    %c10_33 = arith.constant 10 : index
    %c1_34 = arith.constant 1 : index
    %c0_35 = arith.constant 0 : index
    %36 = vector.load %arg1[%c0_32, %c10_33, %c1_34, %c0_35] : memref<1x20x5x128xbf16, #tpu.memory_space<vmem>>, vector<1x4x4x128xbf16>
    %37 = vector.shape_cast %36 : vector<1x4x4x128xbf16> to vector<4x4x128xbf16>
    %38 = vector.shape_cast %37 : vector<4x4x128xbf16> to vector<16x128xbf16>
    %c5_36 = arith.constant 5 : index
    %c0_37 = arith.constant 0 : index
    %c0_38 = arith.constant 0 : index
    %39 = vector.load %arg2[%c5_36, %c0_37, %c0_38] : memref<9x128x128xbf16, #tpu.memory_space<vmem>>, vector<1x128x128xbf16>
    %40 = vector.shape_cast %39 : vector<1x128x128xbf16> to vector<128x128xbf16>
    %cst_39 = arith.constant dense<0.000000e+00> : vector<16x128xf32>
    %41 = tpu.matmul %38, %40, %cst_39 {dimension_numbers = #tpu.dot_dimension_numbers<[1], [0], [0], [1], [0, 0, 1, 1], [], []>} : vector<16x128xbf16>, vector<128x128xbf16>, vector<16x128xf32> -> vector<16x128xf32>
    %42 = arith.addf %35, %41 : vector<16x128xf32>
    %c0_40 = arith.constant 0 : index
    %c1_41 = arith.constant 1 : index
    %c0_42 = arith.constant 0 : index
    %c0_43 = arith.constant 0 : index
    %43 = vector.load %arg1[%c0_40, %c1_41, %c0_42, %c0_43] : memref<1x20x5x128xbf16, #tpu.memory_space<vmem>>, vector<1x4x4x128xbf16>
    %44 = vector.shape_cast %43 : vector<1x4x4x128xbf16> to vector<4x4x128xbf16>
    %45 = vector.shape_cast %44 : vector<4x4x128xbf16> to vector<16x128xbf16>
    %c6 = arith.constant 6 : index
    %c0_44 = arith.constant 0 : index
    %c0_45 = arith.constant 0 : index
    %46 = vector.load %arg2[%c6, %c0_44, %c0_45] : memref<9x128x128xbf16, #tpu.memory_space<vmem>>, vector<1x128x128xbf16>
    %47 = vector.shape_cast %46 : vector<1x128x128xbf16> to vector<128x128xbf16>
    %cst_46 = arith.constant dense<0.000000e+00> : vector<16x128xf32>
    %48 = tpu.matmul %45, %47, %cst_46 {dimension_numbers = #tpu.dot_dimension_numbers<[1], [0], [0], [1], [0, 0, 1, 1], [], []>} : vector<16x128xbf16>, vector<128x128xbf16>, vector<16x128xf32> -> vector<16x128xf32>
    %49 = arith.addf %42, %48 : vector<16x128xf32>
    %c0_47 = arith.constant 0 : index
    %c6_48 = arith.constant 6 : index
    %c0_49 = arith.constant 0 : index
    %c0_50 = arith.constant 0 : index
    %50 = vector.load %arg1[%c0_47, %c6_48, %c0_49, %c0_50] : memref<1x20x5x128xbf16, #tpu.memory_space<vmem>>, vector<1x4x4x128xbf16>
    %51 = vector.shape_cast %50 : vector<1x4x4x128xbf16> to vector<4x4x128xbf16>
    %52 = vector.shape_cast %51 : vector<4x4x128xbf16> to vector<16x128xbf16>
    %c7 = arith.constant 7 : index
    %c0_51 = arith.constant 0 : index
    %c0_52 = arith.constant 0 : index
    %53 = vector.load %arg2[%c7, %c0_51, %c0_52] : memref<9x128x128xbf16, #tpu.memory_space<vmem>>, vector<1x128x128xbf16>
    %54 = vector.shape_cast %53 : vector<1x128x128xbf16> to vector<128x128xbf16>
    %cst_53 = arith.constant dense<0.000000e+00> : vector<16x128xf32>
    %55 = tpu.matmul %52, %54, %cst_53 {dimension_numbers = #tpu.dot_dimension_numbers<[1], [0], [0], [1], [0, 0, 1, 1], [], []>} : vector<16x128xbf16>, vector<128x128xbf16>, vector<16x128xf32> -> vector<16x128xf32>
    %56 = arith.addf %49, %55 : vector<16x128xf32>
    %c0_54 = arith.constant 0 : index
    %c1_55 = arith.constant 1 : index
    %c1_56 = arith.constant 1 : index
    %c0_57 = arith.constant 0 : index
    %57 = vector.load %arg1[%c0_54, %c1_55, %c1_56, %c0_57] : memref<1x20x5x128xbf16, #tpu.memory_space<vmem>>, vector<1x4x4x128xbf16>
    %58 = vector.shape_cast %57 : vector<1x4x4x128xbf16> to vector<4x4x128xbf16>
    %59 = vector.shape_cast %58 : vector<4x4x128xbf16> to vector<16x128xbf16>
    %c8 = arith.constant 8 : index
    %c0_58 = arith.constant 0 : index
    %c0_59 = arith.constant 0 : index
    %60 = vector.load %arg2[%c8, %c0_58, %c0_59] : memref<9x128x128xbf16, #tpu.memory_space<vmem>>, vector<1x128x128xbf16>
    %61 = vector.shape_cast %60 : vector<1x128x128xbf16> to vector<128x128xbf16>
    %cst_60 = arith.constant dense<0.000000e+00> : vector<16x128xf32>
    %62 = tpu.matmul %59, %61, %cst_60 {dimension_numbers = #tpu.dot_dimension_numbers<[1], [0], [0], [1], [0, 0, 1, 1], [], []>} : vector<16x128xbf16>, vector<128x128xbf16>, vector<16x128xf32> -> vector<16x128xf32>
    %63 = arith.addf %56, %62 : vector<16x128xf32>
    %c0_61 = arith.constant 0 : index
    %c0_62 = arith.constant 0 : index
    %64 = vector.load %arg3[%c0_61, %c0_62] : memref<1x128xf32, #tpu.memory_space<vmem>>, vector<1x128xf32>
    %65 = vector.broadcast %64 : vector<1x128xf32> to vector<16x128xf32>
    %66 = arith.addf %63, %65 : vector<16x128xf32>
    %cst_63 = arith.constant 0.000000e+00 : f32
    %67 = vector.broadcast %cst_63 : f32 to vector<16x128xf32>
    %68 = arith.maximumf %66, %67 : vector<16x128xf32>
    %69 = vector.shape_cast %68 : vector<16x128xf32> to vector<1x4x4x128xf32>
    %70 = arith.truncf %69 : vector<1x4x4x128xf32> to vector<1x4x4x128xbf16>
    %c0_64 = arith.constant 0 : index
    %c0_65 = arith.constant 0 : index
    %c0_66 = arith.constant 0 : index
    %c0_67 = arith.constant 0 : index
    %71 = vector.load %arg4[%c0_64, %c0_65, %c0_66, %c0_67] : memref<1x4x4x128xbf16, #tpu.memory_space<vmem>>, vector<1x4x4x128xbf16>
    tpu.vector_store %arg4[%c0_64, %c0_65, %c0_66, %c0_67], %70 {strides = array<i32>} : memref<1x4x4x128xbf16, #tpu.memory_space<vmem>>, vector<1x4x4x128xbf16>,
    return
  }
  func.func @transform_0(%arg0: i32) -> (i32, i32, i32, i32) {
    %c0_i32 = arith.constant 0 : i32
    %c0_i32_0 = arith.constant 0 : i32
    %c0_i32_1 = arith.constant 0 : i32
    %c0_i32_2 = arith.constant 0 : i32
    return %arg0, %c0_i32, %c0_i32_0, %c0_i32_1 : i32, i32, i32, i32
  }
  func.func @transform_1(%arg0: i32) -> (i32, i32, i32) {
    %c0_i32 = arith.constant 0 : i32
    %c0_i32_0 = arith.constant 0 : i32
    %c0_i32_1 = arith.constant 0 : i32
    %c0_i32_2 = arith.constant 0 : i32
    return %c0_i32, %c0_i32_0, %c0_i32_1 : i32, i32, i32
  }
  func.func @transform_2(%arg0: i32) -> (i32, i32) {
    %c0_i32 = arith.constant 0 : i32
    %c0_i32_0 = arith.constant 0 : i32
    %c0_i32_1 = arith.constant 0 : i32
    return %c0_i32, %c0_i32_0 : i32, i32
  }
  func.func @transform_3(%arg0: i32) -> (i32, i32, i32, i32) {
    %c0_i32 = arith.constant 0 : i32
    %c0_i32_0 = arith.constant 0 : i32
    %c0_i32_1 = arith.constant 0 : i32
    %c0_i32_2 = arith.constant 0 : i32
    return %arg0, %c0_i32, %c0_i32_0, %c0_i32_1 : i32, i32, i32, i32
  }
}

</mosaic_0001>

<llo_original>
// kernel: bottleneck_forward.6
$region0: #{bottleneck_forward.6}
  #allocation0 [shape = 'u32[]', space=smem, size = 0x4, offset = 0x4, fixed_abs, tag = 'smem constant byte address 0x4 - core index']
  #allocation1 [shape = 'u32[144,128]{1,0:T(1,128)}', space=vmem, size = 0x12000, scoped, tag = 'internal scratch']
  %s0 = inlined_call_operand.vmem [shape: bf16[32,128], index: 0, kind: input, shape index: {}]
  %s1 = inlined_call_operand.vmem [shape: bf16[128,128], index: 1, kind: input, shape index: {}]
  %s2 = inlined_call_operand.vmem [shape: f32[1,128], index: 2, kind: input, shape index: {}]
  %s3 = inlined_call_operand.vmem [shape: bf16[32,128], index: 3, kind: output, shape index: {}]
  %s4 = sld [smem:[#allocation0]]
  $region22: #{bottleneck_forward.6} parent=0
    _
  %s6 = ssub.s32 1, %s4
  %s7 = scalar_select 0, %s6, %s4
  // Predicated region
  $region2: #{bottleneck_forward.6} parent=0 // pred_check
    _
  $region3: #{bottleneck_forward.6} parent=0 // pred_check_branch
    %9 = sbr.rel (0) target = $region5
  $region4: #{bottleneck_forward.6} parent=0 // pred_region
    _
  $region5: #{bottleneck_forward.6} parent=0 // pred_fallthru
    _
  // Predicated region
  $region6: #{bottleneck_forward.6} parent=0 // pred_check
    _
  $region7: #{bottleneck_forward.6} parent=0 // pred_check_branch
    %11 = sbr.rel (0) target = $region9
  $region8: #{bottleneck_forward.6} parent=0 // pred_region
    _
  $region9: #{bottleneck_forward.6} parent=0 // pred_fallthru
    _
  // Predicated region
  $region10: #{bottleneck_forward.6} parent=0 // pred_check
    _
  $region11: #{bottleneck_forward.6} parent=0 // pred_check_branch
    %13 = sbr.rel (0) target = $region13
  $region12: #{bottleneck_forward.6} parent=0 // pred_region
    _
  $region13: #{bottleneck_forward.6} parent=0 // pred_fallthru
    _
  %v15 = vld [vmem:[%s0] sm:$0xf]
  %v16 = vld [vmem:[%s0 + $0x4] sm:$0xf]
  %v17 = vld [vmem:[%s0 + $0x8] sm:$0xf]
  %v18 = vld [vmem:[%s0 + $0xc] sm:$0xf]
  %v19 = vld [vmem:[%s1] sm:$0xf]
  %v20 = vld [vmem:[%s1 + $0x4] sm:$0xf]
  %v21 = vld [vmem:[%s1 + $0x8] sm:$0xf]
  %v22 = vld [vmem:[%s1 + $0xc] sm:$0xf]
  %v23 = vld [vmem:[%s1 + $0x10] sm:$0xf]
  %v24 = vld [vmem:[%s1 + $0x14] sm:$0xf]
  %v25 = vld [vmem:[%s1 + $0x18] sm:$0xf]
  %v26 = vld [vmem:[%s1 + $0x1c] sm:$0xf]
  %v27 = vld [vmem:[%s1 + $0x20] sm:$0xf]
  %v28 = vld [vmem:[%s1 + $0x24] sm:$0xf]
  %v29 = vld [vmem:[%s1 + $0x28] sm:$0xf]
  %v30 = vld [vmem:[%s1 + $0x2c] sm:$0xf]
  %v31 = vld [vmem:[%s1 + $0x30] sm:$0xf]
  %v32 = vld [vmem:[%s1 + $0x34] sm:$0xf]
  %v33 = vld [vmem:[%s1 + $0x38] sm:$0xf]
  %v34 = vld [vmem:[%s1 + $0x3c] sm:$0xf]
  %v35 = vld [vmem:[%s2] sm:$0x1]
  %v37 = vlaneseq
  %v38 = vshrl.u32 %v37, 7
  %v39 = vsub.s32 0, %v38
  %v40 = vrot.slane %v35, %v39
  %v46 = vunpack.c.l.b16 %v15
  %v47 = vunpack.c.l.b16 %v16
  %v48 = vunpack.c.l.b16 %v17
  %v49 = vunpack.c.l.b16 %v18
  %v50 = vpack.c.b16 %v47, %v46
  %v51 = vpack.c.b16 %v49, %v48
  %v70 = vunpack.c.l.b16 %v19
  %v71 = vunpack.c.l.b16 %v20
  %v72 = vunpack.c.l.b16 %v21
  %v73 = vunpack.c.l.b16 %v22
  %v74 = vunpack.c.l.b16 %v23
  %v75 = vunpack.c.l.b16 %v24
  %v76 = vunpack.c.l.b16 %v25
  %v77 = vunpack.c.l.b16 %v26
  %v78 = vunpack.c.l.b16 %v27
  %v79 = vunpack.c.l.b16 %v28
  %v80 = vunpack.c.l.b16 %v29
  %v81 = vunpack.c.l.b16 %v30
  %v82 = vunpack.c.l.b16 %v31
  %v83 = vunpack.c.l.b16 %v32
  %v84 = vunpack.c.l.b16 %v33
  %v85 = vunpack.c.l.b16 %v34
  %v86 = vpack.c.b16 %v71, %v70
  %v87 = vpack.c.b16 %v73, %v72
  %v88 = vpack.c.b16 %v75, %v74
  %v89 = vpack.c.b16 %v77, %v76
  %v90 = vpack.c.b16 %v79, %v78
  %v91 = vpack.c.b16 %v81, %v80
  %v92 = vpack.c.b16 %v83, %v82
  %v93 = vpack.c.b16 %v85, %v84
  %102 = vmatprep.subr.bf16.mxu0 0
  %103 = vmatpush1.bf16.msra.mxu0 %v93
  %104 = vmatprep.subr.bf16.mxu0 0
  %105 = vmatpush1.bf16.msra.mxu0 %v92
  %106 = vmatprep.subr.bf16.mxu0 0
  %107 = vmatpush1.bf16.msra.mxu0 %v91
  %108 = vmatprep.subr.bf16.mxu0 0
  %109 = vmatpush1.bf16.msra.mxu0 %v90
  %110 = vmatprep.subr.bf16.mxu0 0
  %111 = vmatpush1.bf16.msra.mxu0 %v89
  %112 = vmatprep.subr.bf16.mxu0 0
  %113 = vmatpush1.bf16.msra.mxu0 %v88
  %114 = vmatprep.subr.bf16.mxu0 0
  %115 = vmatpush1.bf16.msra.mxu0 %v87
  %116 = vmatprep.subr.bf16.mxu0 0
  %117 = vmatpush1.bf16.msra.mxu0 %v86
  %118 = vmatprep.subr.bf16.mxu0 0
  %119 = vmatpush2.bf16.msra.mxu0 0
  %120 = vmatprep.subr.bf16.mxu0 0
  %121 = vmatpush2.bf16.msra.mxu0 0
  %122 = vmatprep.subr.bf16.mxu0 0
  %123 = vmatpush2.bf16.msra.mxu0 0
  %124 = vmatprep.subr.bf16.mxu0 0
  %125 = vmatpush2.bf16.msra.mxu0 0
  %126 = vmatprep.subr.bf16.mxu0 0
  %127 = vmatpush2.bf16.msra.mxu0 0
  %128 = vmatprep.subr.bf16.mxu0 0
  %129 = vmatpush2.bf16.msra.mxu0 0
  %130 = vmatprep.subr.bf16.mxu0 0
  %131 = vmatpush2.bf16.msra.mxu0 0
  %132 = vmatprep.subr.bf16.mxu0 0
  %133 = vmatpush2.bf16.msra.mxu0 0
  %134 = vmatprep.mubr.bf16.mxu0 0
  %135 = vmatmul.mubr.bf16.gmra.mxu0 %v50
  %v136 = vpop.f32.mrf.mxu0
  %v137 = vadd.f32 %v40, %v136
  %v138 = vpop.f32.mrf.mxu0
  %v139 = vpop.f32.mrf.mxu0
  %v140 = vadd.f32 %v40, %v139
  %v141 = vpop.f32.mrf.mxu0
  %142 = vmatprep.mubr.bf16.mxu0 0
  %143 = vmatmul.mubr.bf16.gmra.mxu0 %v51
  %v144 = vpop.f32.mrf.mxu0
  %v145 = vadd.f32 %v40, %v144
  %v146 = vpop.f32.mrf.mxu0
  %v147 = vpop.f32.mrf.mxu0
  %v148 = vadd.f32 %v40, %v147
  %v149 = vpop.f32.mrf.mxu0
  %150 = vdwg.mxu0
  %v151 = vpack.c.bf16 %v140, %v137
  %v152 = vpack.c.bf16 %v148, %v145
  %v155 = vunpack.c.l.b16 %v151
  %v156 = vunpack.c.h.b16 %v151
  %v157 = vunpack.c.l.b16 %v152
  %v158 = vunpack.c.h.b16 %v152
  %v159 = vpack.c.b16 %v155, %v155
  %v160 = vpack.c.b16 %v156, %v156
  %v161 = vpack.c.b16 %v157, %v157
  %v162 = vpack.c.b16 %v158, %v158
  %167 = vst [vmem:[%s3] sm:$0xf] %v159
  %168 = vst [vmem:[%s3 + $0x4] sm:$0xf] %v160
  %169 = vst [vmem:[%s3 + $0x8] sm:$0xf] %v161
  %170 = vst [vmem:[%s3 + $0xc] sm:$0xf] %v162
  // Predicated region
  $region14: #{bottleneck_forward.6} parent=0 // pred_check
    _
  $region15: #{bottleneck_forward.6} parent=0 // pred_check_branch
    %172 = sbr.rel (0) target = $region17
  $region16: #{bottleneck_forward.6} parent=0 // pred_region
    _
  $region17: #{bottleneck_forward.6} parent=0 // pred_fallthru
    _
  // Predicated region
  $region18: #{bottleneck_forward.6} parent=0 // pred_check
    _
  $region19: #{bottleneck_forward.6} parent=0 // pred_check_branch
    %174 = sbr.rel (0) target = $region21
  $region20: #{bottleneck_forward.6} parent=0 // pred_region
    _
  $region21: #{bottleneck_forward.6} parent=0 // pred_fallthru
    _

// kernel: bottleneck_forward.4
$region0: #{bottleneck_forward.4}
  #allocation0 [shape = 'u32[]', space=smem, size = 0x4, offset = 0x4, fixed_abs, tag = 'smem constant byte address 0x4 - core index']
  #allocation1 [shape = 'u32[144,128]{1,0:T(1,128)}', space=vmem, size = 0x12000, scoped, tag = 'internal scratch']
  %s0 = inlined_call_operand.vmem [shape: bf16[128,128], index: 0, kind: input, shape index: {}]
  %s1 = inlined_call_operand.vmem [shape: bf16[128,128], index: 1, kind: input, shape index: {}]
  %s2 = inlined_call_operand.vmem [shape: f32[1,128], index: 2, kind: input, shape index: {}]
  %s3 = inlined_call_operand.vmem [shape: bf16[128,128], index: 3, kind: output, shape index: {}]
  %s4 = sld [smem:[#allocation0]]
  $region22: #{bottleneck_forward.4} parent=0
    _
  %s6 = ssub.s32 1, %s4
  %s7 = scalar_select 0, %s6, %s4
  // Predicated region
  $region2: #{bottleneck_forward.4} parent=0 // pred_check
    _
  $region3: #{bottleneck_forward.4} parent=0 // pred_check_branch
    %9 = sbr.rel (0) target = $region5
  $region4: #{bottleneck_forward.4} parent=0 // pred_region
    _
  $region5: #{bottleneck_forward.4} parent=0 // pred_fallthru
    _
  // Predicated region
  $region6: #{bottleneck_forward.4} parent=0 // pred_check
    _
  $region7: #{bottleneck_forward.4} parent=0 // pred_check_branch
    %11 = sbr.rel (0) target = $region9
  $region8: #{bottleneck_forward.4} parent=0 // pred_region
    _
  $region9: #{bottleneck_forward.4} parent=0 // pred_fallthru
    _
  // Predicated region
  $region10: #{bottleneck_forward.4} parent=0 // pred_check
    _
  $region11: #{bottleneck_forward.4} parent=0 // pred_check_branch
    %13 = sbr.rel (0) target = $region13
  $region12: #{bottleneck_forward.4} parent=0 // pred_region
    _
  $region13: #{bottleneck_forward.4} parent=0 // pred_fallthru
    _
  %v15 = vld [vmem:[%s0] sm:$0xf]
  %v16 = vld [vmem:[%s0 + $0x4] sm:$0xf]
  %v17 = vld [vmem:[%s0 + $0x8] sm:$0xf]
  %v18 = vld [vmem:[%s0 + $0xc] sm:$0xf]
  %v19 = vld [vmem:[%s0 + $0x10] sm:$0xf]
  %v20 = vld [vmem:[%s0 + $0x14] sm:$0xf]
  %v21 = vld [vmem:[%s0 + $0x18] sm:$0xf]
  %v22 = vld [vmem:[%s0 + $0x1c] sm:$0xf]
  %v23 = vld [vmem:[%s0 + $0x20] sm:$0xf]
  %v24 = vld [vmem:[%s0 + $0x24] sm:$0xf]
  %v25 = vld [vmem:[%s0 + $0x28] sm:$0xf]
  %v26 = vld [vmem:[%s0 + $0x2c] sm:$0xf]
  %v27 = vld [vmem:[%s0 + $0x30] sm:$0xf]
  %v28 = vld [vmem:[%s0 + $0x34] sm:$0xf]
  %v29 = vld [vmem:[%s0 + $0x38] sm:$0xf]
  %v30 = vld [vmem:[%s0 + $0x3c] sm:$0xf]
  %v31 = vld [vmem:[%s1] sm:$0xf]
  %v32 = vld [vmem:[%s1 + $0x4] sm:$0xf]
  %v33 = vld [vmem:[%s1 + $0x8] sm:$0xf]
  %v34 = vld [vmem:[%s1 + $0xc] sm:$0xf]
  %v35 = vld [vmem:[%s1 + $0x10] sm:$0xf]
  %v36 = vld [vmem:[%s1 + $0x14] sm:$0xf]
  %v37 = vld [vmem:[%s1 + $0x18] sm:$0xf]
  %v38 = vld [vmem:[%s1 + $0x1c] sm:$0xf]
  %v39 = vld [vmem:[%s1 + $0x20] sm:$0xf]
  %v40 = vld [vmem:[%s1 + $0x24] sm:$0xf]
  %v41 = vld [vmem:[%s1 + $0x28] sm:$0xf]
  %v42 = vld [vmem:[%s1 + $0x2c] sm:$0xf]
  %v43 = vld [vmem:[%s1 + $0x30] sm:$0xf]
  %v44 = vld [vmem:[%s1 + $0x34] sm:$0xf]
  %v45 = vld [vmem:[%s1 + $0x38] sm:$0xf]
  %v46 = vld [vmem:[%s1 + $0x3c] sm:$0xf]
  %v47 = vld [vmem:[%s2] sm:$0x1]
  %v49 = vlaneseq
  %v50 = vshrl.u32 %v49, 7
  %v51 = vsub.s32 0, %v50
  %v52 = vrot.slane %v47, %v51
  %v70 = vunpack.c.l.b16 %v15
  %v71 = vunpack.c.l.b16 %v16
  %v72 = vunpack.c.l.b16 %v17
  %v73 = vunpack.c.l.b16 %v18
  %v74 = vunpack.c.l.b16 %v19
  %v75 = vunpack.c.l.b16 %v20
  %v76 = vunpack.c.l.b16 %v21
  %v77 = vunpack.c.l.b16 %v22
  %v78 = vunpack.c.l.b16 %v23
  %v79 = vunpack.c.l.b16 %v24
  %v80 = vunpack.c.l.b16 %v25
  %v81 = vunpack.c.l.b16 %v26
  %v82 = vunpack.c.l.b16 %v27
  %v83 = vunpack.c.l.b16 %v28
  %v84 = vunpack.c.l.b16 %v29
  %v85 = vunpack.c.l.b16 %v30
  %v86 = vpack.c.b16 %v71, %v70
  %v87 = vpack.c.b16 %v73, %v72
  %v88 = vpack.c.b16 %v75, %v74
  %v89 = vpack.c.b16 %v77, %v76
  %v90 = vpack.c.b16 %v79, %v78
  %v91 = vpack.c.b16 %v81, %v80
  %v92 = vpack.c.b16 %v83, %v82
  %v93 = vpack.c.b16 %v85, %v84
  %v118 = vunpack.c.l.b16 %v31
  %v119 = vunpack.c.l.b16 %v32
  %v120 = vunpack.c.l.b16 %v33
  %v121 = vunpack.c.l.b16 %v34
  %v122 = vunpack.c.l.b16 %v35
  %v123 = vunpack.c.l.b16 %v36
  %v124 = vunpack.c.l.b16 %v37
  %v125 = vunpack.c.l.b16 %v38
  %v126 = vunpack.c.l.b16 %v39
  %v127 = vunpack.c.l.b16 %v40
  %v128 = vunpack.c.l.b16 %v41
  %v129 = vunpack.c.l.b16 %v42
  %v130 = vunpack.c.l.b16 %v43
  %v131 = vunpack.c.l.b16 %v44
  %v132 = vunpack.c.l.b16 %v45
  %v133 = vunpack.c.l.b16 %v46
  %v134 = vpack.c.b16 %v119, %v118
  %v135 = vpack.c.b16 %v121, %v120
  %v136 = vpack.c.b16 %v123, %v122
  %v137 = vpack.c.b16 %v125, %v124
  %v138 = vpack.c.b16 %v127, %v126
  %v139 = vpack.c.b16 %v129, %v128
  %v140 = vpack.c.b16 %v131, %v130
  %v141 = vpack.c.b16 %v133, %v132
  %150 = vmatprep.subr.bf16.mxu0 0
  %151 = vmatpush1.bf16.msra.mxu0 %v141
  %152 = vmatprep.subr.bf16.mxu0 0
  %153 = vmatpush1.bf16.msra.mxu0 %v140
  %154 = vmatprep.subr.bf16.mxu0 0
  %155 = vmatpush1.bf16.msra.mxu0 %v139
  %156 = vmatprep.subr.bf16.mxu0 0
  %157 = vmatpush1.bf16.msra.mxu0 %v138
  %158 = vmatprep.subr.bf16.mxu0 0
  %159 = vmatpush1.bf16.msra.mxu0 %v137
  %160 = vmatprep.subr.bf16.mxu0 0
  %161 = vmatpush1.bf16.msra.mxu0 %v136
  %162 = vmatprep.subr.bf16.mxu0 0
  %163 = vmatpush1.bf16.msra.mxu0 %v135
  %164 = vmatprep.subr.bf16.mxu0 0
  %165 = vmatpush1.bf16.msra.mxu0 %v134
  %166 = vmatprep.subr.bf16.mxu0 0
  %167 = vmatpush2.bf16.msra.mxu0 0
  %168 = vmatprep.subr.bf16.mxu0 0
  %169 = vmatpush2.bf16.msra.mxu0 0
  %170 = vmatprep.subr.bf16.mxu0 0
  %171 = vmatpush2.bf16.msra.mxu0 0
  %172 = vmatprep.subr.bf16.mxu0 0
  %173 = vmatpush2.bf16.msra.mxu0 0
  %174 = vmatprep.subr.bf16.mxu0 0
  %175 = vmatpush2.bf16.msra.mxu0 0
  %176 = vmatprep.subr.bf16.mxu0 0
  %177 = vmatpush2.bf16.msra.mxu0 0
  %178 = vmatprep.subr.bf16.mxu0 0
  %179 = vmatpush2.bf16.msra.mxu0 0
  %180 = vmatprep.subr.bf16.mxu0 0
  %181 = vmatpush2.bf16.msra.mxu0 0
  %182 = vmatprep.mubr.bf16.mxu0 0
  %183 = vmatmul.mubr.bf16.gmra.mxu0 %v86
  %v184 = vpop.f32.mrf.mxu0
  %v185 = vadd.f32 %v52, %v184
  %v186 = vpop.f32.mrf.mxu0
  %v187 = vpop.f32.mrf.mxu0
  %v188 = vadd.f32 %v52, %v187
  %v189 = vpop.f32.mrf.mxu0
  %190 = vmatprep.mubr.bf16.mxu0 0
  %191 = vmatmul.mubr.bf16.gmra.mxu0 %v87
  %v192 = vpop.f32.mrf.mxu0
  %v193 = vadd.f32 %v52, %v192
  %v194 = vpop.f32.mrf.mxu0
  %v195 = vpop.f32.mrf.mxu0
  %v196 = vadd.f32 %v52, %v195
  %v197 = vpop.f32.mrf.mxu0
  %198 = vmatprep.mubr.bf16.mxu0 0
  %199 = vmatmul.mubr.bf16.gmra.mxu0 %v88
  %v200 = vpop.f32.mrf.mxu0
  %v201 = vadd.f32 %v52, %v200
  %v202 = vpop.f32.mrf.mxu0
  %v203 = vpop.f32.mrf.mxu0
  %v204 = vadd.f32 %v52, %v203
  %v205 = vpop.f32.mrf.mxu0
  %206 = vmatprep.mubr.bf16.mxu0 0
  %207 = vmatmul.mubr.bf16.gmra.mxu0 %v89
  %v208 = vpop.f32.mrf.mxu0
  %v209 = vadd.f32 %v52, %v208
  %v210 = vpop.f32.mrf.mxu0
  %v211 = vpop.f32.mrf.mxu0
  %v212 = vadd.f32 %v52, %v211
  %v213 = vpop.f32.mrf.mxu0
  %214 = vmatprep.mubr.bf16.mxu0 0
  %215 = vmatmul.mubr.bf16.gmra.mxu0 %v90
  %v216 = vpop.f32.mrf.mxu0
  %v217 = vadd.f32 %v52, %v216
  %v218 = vpop.f32.mrf.mxu0
  %v219 = vpop.f32.mrf.mxu0
  %v220 = vadd.f32 %v52, %v219
  %v221 = vpop.f32.mrf.mxu0
  %222 = vmatprep.mubr.bf16.mxu0 0
  %223 = vmatmul.mubr.bf16.gmra.mxu0 %v91
  %v224 = vpop.f32.mrf.mxu0
  %v225 = vadd.f32 %v52, %v224
  %v226 = vpop.f32.mrf.mxu0
  %v227 = vpop.f32.mrf.mxu0
  %v228 = vadd.f32 %v52, %v227
  %v229 = vpop.f32.mrf.mxu0
  %230 = vmatprep.mubr.bf16.mxu0 0
  %231 = vmatmul.mubr.bf16.gmra.mxu0 %v92
  %v232 = vpop.f32.mrf.mxu0
  %v233 = vadd.f32 %v52, %v232
  %v234 = vpop.f32.mrf.mxu0
  %v235 = vpop.f32.mrf.mxu0
  %v236 = vadd.f32 %v52, %v235
  %v237 = vpop.f32.mrf.mxu0
  %238 = vmatprep.mubr.bf16.mxu0 0
  %239 = vmatmul.mubr.bf16.gmra.mxu0 %v93
  %v240 = vpop.f32.mrf.mxu0
  %v241 = vadd.f32 %v52, %v240
  %v242 = vpop.f32.mrf.mxu0
  %v243 = vpop.f32.mrf.mxu0
  %v244 = vadd.f32 %v52, %v243
  %v245 = vpop.f32.mrf.mxu0
  %246 = vdwg.mxu0
  %v247 = vmax.f32 %v185, 0.0
  %v248 = vmax.f32 %v188, 0.0
  %v249 = vmax.f32 %v193, 0.0
  %v250 = vmax.f32 %v196, 0.0
  %v251 = vmax.f32 %v201, 0.0
  %v252 = vmax.f32 %v204, 0.0
  %v253 = vmax.f32 %v209, 0.0
  %v254 = vmax.f32 %v212, 0.0
  %v255 = vmax.f32 %v217, 0.0
  %v256 = vmax.f32 %v220, 0.0
  %v257 = vmax.f32 %v225, 0.0
  %v258 = vmax.f32 %v228, 0.0
  %v259 = vmax.f32 %v233, 0.0
  %v260 = vmax.f32 %v236, 0.0
  %v261 = vmax.f32 %v241, 0.0
  %v262 = vmax.f32 %v244, 0.0
  %v263 = vpack.c.bf16 %v248, %v247
  %v264 = vpack.c.bf16 %v250, %v249
  %v265 = vpack.c.bf16 %v252, %v251
  %v266 = vpack.c.bf16 %v254, %v253
  %v267 = vpack.c.bf16 %v256, %v255
  %v268 = vpack.c.bf16 %v258, %v257
  %v269 = vpack.c.bf16 %v260, %v259
  %v270 = vpack.c.bf16 %v262, %v261
  %v279 = vunpack.c.l.b16 %v263
  %v280 = vunpack.c.h.b16 %v263
  %v281 = vunpack.c.l.b16 %v264
  %v282 = vunpack.c.h.b16 %v264
  %v283 = vunpack.c.l.b16 %v265
  %v284 = vunpack.c.h.b16 %v265
  %v285 = vunpack.c.l.b16 %v266
  %v286 = vunpack.c.h.b16 %v266
  %v287 = vunpack.c.l.b16 %v267
  %v288 = vunpack.c.h.b16 %v267
  %v289 = vunpack.c.l.b16 %v268
  %v290 = vunpack.c.h.b16 %v268
  %v291 = vunpack.c.l.b16 %v269
  %v292 = vunpack.c.h.b16 %v269
  %v293 = vunpack.c.l.b16 %v270
  %v294 = vunpack.c.h.b16 %v270
  %v295 = vpack.c.b16 %v279, %v279
  %v296 = vpack.c.b16 %v280, %v280
  %v297 = vpack.c.b16 %v281, %v281
  %v298 = vpack.c.b16 %v282, %v282
  %v299 = vpack.c.b16 %v283, %v283
  %v300 = vpack.c.b16 %v284, %v284
  %v301 = vpack.c.b16 %v285, %v285
  %v302 = vpack.c.b16 %v286, %v286
  %v303 = vpack.c.b16 %v287, %v287
  %v304 = vpack.c.b16 %v288, %v288
  %v305 = vpack.c.b16 %v289, %v289
  %v306 = vpack.c.b16 %v290, %v290
  %v307 = vpack.c.b16 %v291, %v291
  %v308 = vpack.c.b16 %v292, %v292
  %v309 = vpack.c.b16 %v293, %v293
  %v310 = vpack.c.b16 %v294, %v294
  %327 = vst [vmem:[%s3] sm:$0xf] %v295
  %328 = vst [vmem:[%s3 + $0x4] sm:$0xf] %v296
  %329 = vst [vmem:[%s3 + $0x8] sm:$0xf] %v297
  %330 = vst [vmem:[%s3 + $0xc] sm:$0xf] %v298
  %331 = vst [vmem:[%s3 + $0x10] sm:$0xf] %v299
  %332 = vst [vmem:[%s3 + $0x14] sm:$0xf] %v300
  %333 = vst [vmem:[%s3 + $0x18] sm:$0xf] %v301
  %334 = vst [vmem:[%s3 + $0x1c] sm:$0xf] %v302
  %335 = vst [vmem:[%s3 + $0x20] sm:$0xf] %v303
  %336 = vst [vmem:[%s3 + $0x24] sm:$0xf] %v304
  %337 = vst [vmem:[%s3 + $0x28] sm:$0xf] %v305
  %338 = vst [vmem:[%s3 + $0x2c] sm:$0xf] %v306
  %339 = vst [vmem:[%s3 + $0x30] sm:$0xf] %v307
  %340 = vst [vmem:[%s3 + $0x34] sm:$0xf] %v308
  %341 = vst [vmem:[%s3 + $0x38] sm:$0xf] %v309
  %342 = vst [vmem:[%s3 + $0x3c] sm:$0xf] %v310
  // Predicated region
  $region14: #{bottleneck_forward.4} parent=0 // pred_check
    _
  $region15: #{bottleneck_forward.4} parent=0 // pred_check_branch
    %344 = sbr.rel (0) target = $region17
  $region16: #{bottleneck_forward.4} parent=0 // pred_region
    _
  $region17: #{bottleneck_forward.4} parent=0 // pred_fallthru
    _
  // Predicated region
  $region18: #{bottleneck_forward.4} parent=0 // pred_check
    _
  $region19: #{bottleneck_forward.4} parent=0 // pred_check_branch
    %346 = sbr.rel (0) target = $region21
  $region20: #{bottleneck_forward.4} parent=0 // pred_region
    _
  $region21: #{bottleneck_forward.4} parent=0 // pred_fallthru
    _

// kernel: bottleneck_forward.7
$region0: #{bottleneck_forward.7}
  #allocation0 [shape = 'u32[]', space=smem, size = 0x4, offset = 0x4, fixed_abs, tag = 'smem constant byte address 0x4 - core index']
  #allocation1 [shape = 'u32[144,128]{1,0:T(1,128)}', space=vmem, size = 0x12000, scoped, tag = 'internal scratch']
  %s0 = inlined_call_operand.vmem [shape: bf16[32,128], index: 0, kind: input, shape index: {}]
  %s1 = inlined_call_operand.vmem [shape: bf16[128,128], index: 1, kind: input, shape index: {}]
  %s2 = inlined_call_operand.vmem [shape: f32[1,128], index: 2, kind: input, shape index: {}]
  %s3 = inlined_call_operand.vmem [shape: bf16[32,128], index: 3, kind: input, shape index: {}]
  %s4 = inlined_call_operand.vmem [shape: bf16[32,128], index: 4, kind: output, shape index: {0}]
  %s5 = inlined_call_operand.vmem [shape: bf16[32,128], index: 5, kind: output, shape index: {1}]
  %6 = xla_tuple %s4, %s5
  %s7 = sld [smem:[#allocation0]]
  $region34: #{bottleneck_forward.7} parent=0
    _
  %s9 = ssub.s32 1, %s7
  %s10 = scalar_select 0, %s9, %s7
  // Predicated region
  $region2: #{bottleneck_forward.7} parent=0 // pred_check
    _
  $region3: #{bottleneck_forward.7} parent=0 // pred_check_branch
    %12 = sbr.rel (0) target = $region5
  $region4: #{bottleneck_forward.7} parent=0 // pred_region
    _
  $region5: #{bottleneck_forward.7} parent=0 // pred_fallthru
    _
  // Predicated region
  $region6: #{bottleneck_forward.7} parent=0 // pred_check
    _
  $region7: #{bottleneck_forward.7} parent=0 // pred_check_branch
    %14 = sbr.rel (0) target = $region9
  $region8: #{bottleneck_forward.7} parent=0 // pred_region
    _
  $region9: #{bottleneck_forward.7} parent=0 // pred_fallthru
    _
  // Predicated region
  $region10: #{bottleneck_forward.7} parent=0 // pred_check
    _
  $region11: #{bottleneck_forward.7} parent=0 // pred_check_branch
    %16 = sbr.rel (0) target = $region13
  $region12: #{bottleneck_forward.7} parent=0 // pred_region
    _
  $region13: #{bottleneck_forward.7} parent=0 // pred_fallthru
    _
  // Predicated region
  $region14: #{bottleneck_forward.7} parent=0 // pred_check
    _
  $region15: #{bottleneck_forward.7} parent=0 // pred_check_branch
    %18 = sbr.rel (0) target = $region17
  $region16: #{bottleneck_forward.7} parent=0 // pred_region
    _
  $region17: #{bottleneck_forward.7} parent=0 // pred_fallthru
    _
  %v20 = vld [vmem:[%s0] sm:$0xf]
  %v21 = vld [vmem:[%s0 + $0x4] sm:$0xf]
  %v22 = vld [vmem:[%s0 + $0x8] sm:$0xf]
  %v23 = vld [vmem:[%s0 + $0xc] sm:$0xf]
  %v24 = vld [vmem:[%s1] sm:$0xf]
  %v25 = vld [vmem:[%s1 + $0x4] sm:$0xf]
  %v26 = vld [vmem:[%s1 + $0x8] sm:$0xf]
  %v27 = vld [vmem:[%s1 + $0xc] sm:$0xf]
  %v28 = vld [vmem:[%s1 + $0x10] sm:$0xf]
  %v29 = vld [vmem:[%s1 + $0x14] sm:$0xf]
  %v30 = vld [vmem:[%s1 + $0x18] sm:$0xf]
  %v31 = vld [vmem:[%s1 + $0x1c] sm:$0xf]
  %v32 = vld [vmem:[%s1 + $0x20] sm:$0xf]
  %v33 = vld [vmem:[%s1 + $0x24] sm:$0xf]
  %v34 = vld [vmem:[%s1 + $0x28] sm:$0xf]
  %v35 = vld [vmem:[%s1 + $0x2c] sm:$0xf]
  %v36 = vld [vmem:[%s1 + $0x30] sm:$0xf]
  %v37 = vld [vmem:[%s1 + $0x34] sm:$0xf]
  %v38 = vld [vmem:[%s1 + $0x38] sm:$0xf]
  %v39 = vld [vmem:[%s1 + $0x3c] sm:$0xf]
  %v40 = vld [vmem:[%s2] sm:$0x1]
  %v42 = vlaneseq
  %v43 = vshrl.u32 %v42, 7
  %v44 = vsub.s32 0, %v43
  %v45 = vrot.slane %v40, %v44
  %v51 = vunpack.c.l.b16 %v20
  %v52 = vunpack.c.l.b16 %v21
  %v53 = vunpack.c.l.b16 %v22
  %v54 = vunpack.c.l.b16 %v23
  %v55 = vpack.c.b16 %v52, %v51
  %v56 = vpack.c.b16 %v54, %v53
  %v75 = vunpack.c.l.b16 %v24
  %v76 = vunpack.c.l.b16 %v25
  %v77 = vunpack.c.l.b16 %v26
  %v78 = vunpack.c.l.b16 %v27
  %v79 = vunpack.c.l.b16 %v28
  %v80 = vunpack.c.l.b16 %v29
  %v81 = vunpack.c.l.b16 %v30
  %v82 = vunpack.c.l.b16 %v31
  %v83 = vunpack.c.l.b16 %v32
  %v84 = vunpack.c.l.b16 %v33
  %v85 = vunpack.c.l.b16 %v34
  %v86 = vunpack.c.l.b16 %v35
  %v87 = vunpack.c.l.b16 %v36
  %v88 = vunpack.c.l.b16 %v37
  %v89 = vunpack.c.l.b16 %v38
  %v90 = vunpack.c.l.b16 %v39
  %v91 = vpack.c.b16 %v76, %v75
  %v92 = vpack.c.b16 %v78, %v77
  %v93 = vpack.c.b16 %v80, %v79
  %v94 = vpack.c.b16 %v82, %v81
  %v95 = vpack.c.b16 %v84, %v83
  %v96 = vpack.c.b16 %v86, %v85
  %v97 = vpack.c.b16 %v88, %v87
  %v98 = vpack.c.b16 %v90, %v89
  %107 = vmatprep.subr.bf16.mxu0 0
  %108 = vmatpush1.bf16.msra.mxu0 %v98
  %109 = vmatprep.subr.bf16.mxu0 0
  %110 = vmatpush1.bf16.msra.mxu0 %v97
  %111 = vmatprep.subr.bf16.mxu0 0
  %112 = vmatpush1.bf16.msra.mxu0 %v96
  %113 = vmatprep.subr.bf16.mxu0 0
  %114 = vmatpush1.bf16.msra.mxu0 %v95
  %115 = vmatprep.subr.bf16.mxu0 0
  %116 = vmatpush1.bf16.msra.mxu0 %v94
  %117 = vmatprep.subr.bf16.mxu0 0
  %118 = vmatpush1.bf16.msra.mxu0 %v93
  %119 = vmatprep.subr.bf16.mxu0 0
  %120 = vmatpush1.bf16.msra.mxu0 %v92
  %121 = vmatprep.subr.bf16.mxu0 0
  %122 = vmatpush1.bf16.msra.mxu0 %v91
  %123 = vmatprep.subr.bf16.mxu0 0
  %124 = vmatpush2.bf16.msra.mxu0 0
  %125 = vmatprep.subr.bf16.mxu0 0
  %126 = vmatpush2.bf16.msra.mxu0 0
  %127 = vmatprep.subr.bf16.mxu0 0
  %128 = vmatpush2.bf16.msra.mxu0 0
  %129 = vmatprep.subr.bf16.mxu0 0
  %130 = vmatpush2.bf16.msra.mxu0 0
  %131 = vmatprep.subr.bf16.mxu0 0
  %132 = vmatpush2.bf16.msra.mxu0 0
  %133 = vmatprep.subr.bf16.mxu0 0
  %134 = vmatpush2.bf16.msra.mxu0 0
  %135 = vmatprep.subr.bf16.mxu0 0
  %136 = vmatpush2.bf16.msra.mxu0 0
  %137 = vmatprep.subr.bf16.mxu0 0
  %138 = vmatpush2.bf16.msra.mxu0 0
  %139 = vmatprep.mubr.bf16.mxu0 0
  %140 = vmatmul.mubr.bf16.gmra.mxu0 %v55
  %v141 = vpop.f32.mrf.mxu0
  %v142 = vadd.f32 %v45, %v141
  %v143 = vpop.f32.mrf.mxu0
  %v144 = vpop.f32.mrf.mxu0
  %v145 = vadd.f32 %v45, %v144
  %v146 = vpop.f32.mrf.mxu0
  %147 = vmatprep.mubr.bf16.mxu0 0
  %148 = vmatmul.mubr.bf16.gmra.mxu0 %v56
  %v149 = vpop.f32.mrf.mxu0
  %v150 = vadd.f32 %v45, %v149
  %v151 = vpop.f32.mrf.mxu0
  %v152 = vpop.f32.mrf.mxu0
  %v153 = vadd.f32 %v45, %v152
  %v154 = vpop.f32.mrf.mxu0
  %155 = vdwg.mxu0
  %v156 = vld [vmem:[%s3] sm:$0xf]
  %v157 = vld [vmem:[%s3 + $0x4] sm:$0xf]
  %v158 = vld [vmem:[%s3 + $0x8] sm:$0xf]
  %v159 = vld [vmem:[%s3 + $0xc] sm:$0xf]
  %v160 = vunpack.c.l.bf16 %v156
  %v161 = vunpack.c.l.bf16 %v157
  %v162 = vunpack.c.l.bf16 %v158
  %v163 = vunpack.c.l.bf16 %v159
  %v164 = vadd.f32 %v142, %v160
  %v165 = vadd.f32 %v145, %v161
  %v166 = vadd.f32 %v150, %v162
  %v167 = vadd.f32 %v153, %v163
  %v168 = vpack.c.bf16 %v165, %v164
  %v169 = vpack.c.bf16 %v167, %v166
  %v172 = vunpack.c.l.b16 %v168
  %v173 = vunpack.c.h.b16 %v168
  %v174 = vunpack.c.l.b16 %v169
  %v175 = vunpack.c.h.b16 %v169
  %v176 = vpack.c.b16 %v172, %v172
  %v177 = vpack.c.b16 %v173, %v173
  %v178 = vpack.c.b16 %v174, %v174
  %v179 = vpack.c.b16 %v175, %v175
  %184 = vst [vmem:[%s5] sm:$0xf] %v176
  %185 = vst [vmem:[%s5 + $0x4] sm:$0xf] %v177
  %186 = vst [vmem:[%s5 + $0x8] sm:$0xf] %v178
  %187 = vst [vmem:[%s5 + $0xc] sm:$0xf] %v179
  %v188 = vmax.f32 %v164, 0.0
  %v189 = vmax.f32 %v165, 0.0
  %v190 = vmax.f32 %v166, 0.0
  %v191 = vmax.f32 %v167, 0.0
  %v192 = vpack.c.bf16 %v189, %v188
  %v193 = vpack.c.bf16 %v191, %v190
  %v196 = vunpack.c.l.b16 %v192
  %v197 = vunpack.c.h.b16 %v192
  %v198 = vunpack.c.l.b16 %v193
  %v199 = vunpack.c.h.b16 %v193
  %v200 = vpack.c.b16 %v196, %v196
  %v201 = vpack.c.b16 %v197, %v197
  %v202 = vpack.c.b16 %v198, %v198
  %v203 = vpack.c.b16 %v199, %v199
  %208 = vst [vmem:[%s4] sm:$0xf] %v200
  %209 = vst [vmem:[%s4 + $0x4] sm:$0xf] %v201
  %210 = vst [vmem:[%s4 + $0x8] sm:$0xf] %v202
  %211 = vst [vmem:[%s4 + $0xc] sm:$0xf] %v203
  // Predicated region
  $region18: #{bottleneck_forward.7} parent=0 // pred_check
    _
  $region19: #{bottleneck_forward.7} parent=0 // pred_check_branch
    %213 = sbr.rel (0) target = $region21
  $region20: #{bottleneck_forward.7} parent=0 // pred_region
    _
  $region21: #{bottleneck_forward.7} parent=0 // pred_fallthru
    _
  // Predicated region
  $region22: #{bottleneck_forward.7} parent=0 // pred_check
    _
  $region23: #{bottleneck_forward.7} parent=0 // pred_check_branch
    %215 = sbr.rel (0) target = $region25
  $region24: #{bottleneck_forward.7} parent=0 // pred_region
    _
  $region25: #{bottleneck_forward.7} parent=0 // pred_fallthru
    _
  // Predicated region
  $region26: #{bottleneck_forward.7} parent=0 // pred_check
    _
  $region27: #{bottleneck_forward.7} parent=0 // pred_check_branch
    %217 = sbr.rel (0) target = $region29
  $region28: #{bottleneck_forward.7} parent=0 // pred_region
    _
  $region29: #{bottleneck_forward.7} parent=0 // pred_fallthru
    _
  // Predicated region
  $region30: #{bottleneck_forward.7} parent=0 // pred_check
    _
  $region31: #{bottleneck_forward.7} parent=0 // pred_check_branch
    %219 = sbr.rel (0) target = $region33
  $region32: #{bottleneck_forward.7} parent=0 // pred_region
    _
  $region33: #{bottleneck_forward.7} parent=0 // pred_fallthru
    _

// kernel: bottleneck_forward.5
$region0: #{bottleneck_forward.5}
  #allocation0 [shape = 'u32[]', space=smem, size = 0x4, offset = 0x4, fixed_abs, tag = 'smem constant byte address 0x4 - core index']
  #allocation1 [shape = 'u32[144,128]{1,0:T(1,128)}', space=vmem, size = 0x12000, scoped, tag = 'internal scratch']
  %s0 = inlined_call_operand.vmem [shape: bf16[2,20,5,128], index: 0, kind: input, shape index: {}]
  %s1 = inlined_call_operand.vmem [shape: bf16[9,128,128], index: 1, kind: input, shape index: {}]
  %s2 = inlined_call_operand.vmem [shape: f32[1,128], index: 2, kind: input, shape index: {}]
  %s3 = inlined_call_operand.vmem [shape: bf16[2,4,4,128], index: 3, kind: output, shape index: {}]
  %s4 = sld [smem:[#allocation0]]
  $region45: #{bottleneck_forward.5} parent=0
    _
  %s6 = ssub.s32 1, %s4
  %s7 = scalar_select 0, %s6, %s4
  loop: start=0, step=1, limit=4
  $region2: #{bottleneck_forward.5} parent=0 // loop_pre_header
    _
  $region3: #{bottleneck_forward.5} parent=0 // loop_header
    %s9 = sphi 0, %s13
    %p10 = scmp.ge.s32.totalorder %s9, 4
    %s19 = sphi 0, %s21
    %s22 = sphi 0, %s19
    %s23 = sphi 0, %s22
    %s39 = sphi 0, %s23
    %s43 = sphi 0, %s43
    %s45 = sphi 0, %s43
    %s46 = sphi 0, %s45
    %s60 = sphi 0, %s46
    %s64 = sphi 0, %s64
    %s66 = sphi 0, %s64
    %s67 = sphi 0, %s66
    %s81 = sphi 0, %s67
    %s87 = sphi 0, %s89
    %s90 = sphi 0, %s87
    %s91 = sphi 0, %s90
    %s107 = sphi 0, %s91
  $region4: #{bottleneck_forward.5} parent=0 // loop_header_branch
    %12 = sbr.rel (%p10) target = $region8
  $region5: #{bottleneck_forward.5} parent=0 // loop_body
    %s14 = ssub.s32 %s9, 1
    %s15 = ssub.s32 %s9, 2
    %s16 = sadd.s32 %s9, 1
    %s17 = ssub.s32 %s9, %s16
    %p18 = scmp.eq.s32.totalorder %s17, 0
    %s20 = sadd.s32 %s19, 1
    %s21 = scalar_select %p18, %s19, %s20
    %p24 = pneg %p18
    %p25 = scmp.eq.s32.totalorder %s9, 1
    %p26 = por %p24, %p25
    %p27 = scmp.ne.s32.totalorder %s19, %s22
    %p28 = scmp.eq.s32.totalorder %s9, 0
    %p29 = por %p27, %p28
    %p30 = scmp.ne.s32.totalorder %s19, %s22
    %p31 = scmp.eq.s32.totalorder %s14, 1
    %p32 = por %p30, %p31
    %p33 = scmp.ne.s32.totalorder %s22, %s23
    %p34 = scmp.eq.s32.totalorder %s14, 0
    %p35 = por %p33, %p34
    %p36 = scmp.ne.s32.totalorder %s22, %s23
    %p37 = scmp.eq.s32.totalorder %s15, 1
    %p38 = por %p36, %p37
    %p40 = scmp.ne.s32.totalorder %s23, %s39
    %p41 = scmp.eq.s32.totalorder %s15, 0
    %p42 = por %p40, %p41
    %s44 = sadd.s32 %s43, 1
    %p47 = scmp.eq.s32.totalorder %s9, 1
    %p48 = scmp.ne.s32.totalorder %s43, %s45
    %p49 = scmp.eq.s32.totalorder %s9, 0
    %p50 = por %p48, %p49
    %p51 = scmp.ne.s32.totalorder %s43, %s45
    %p52 = scmp.eq.s32.totalorder %s14, 1
    %p53 = por %p51, %p52
    %p54 = scmp.ne.s32.totalorder %s45, %s46
    %p55 = scmp.eq.s32.totalorder %s14, 0
    %p56 = por %p54, %p55
    %p57 = scmp.ne.s32.totalorder %s45, %s46
    %p58 = scmp.eq.s32.totalorder %s15, 1
    %p59 = por %p57, %p58
    %p61 = scmp.ne.s32.totalorder %s46, %s60
    %p62 = scmp.eq.s32.totalorder %s15, 0
    %p63 = por %p61, %p62
    %s65 = sadd.s32 %s64, 1
    %p68 = scmp.eq.s32.totalorder %s9, 1
    %p69 = scmp.ne.s32.totalorder %s64, %s66
    %p70 = scmp.eq.s32.totalorder %s9, 0
    %p71 = por %p69, %p70
    %p72 = scmp.ne.s32.totalorder %s64, %s66
    %p73 = scmp.eq.s32.totalorder %s14, 1
    %p74 = por %p72, %p73
    %p75 = scmp.ne.s32.totalorder %s66, %s67
    %p76 = scmp.eq.s32.totalorder %s14, 0
    %p77 = por %p75, %p76
    %p78 = scmp.ne.s32.totalorder %s66, %s67
    %p79 = scmp.eq.s32.totalorder %s15, 1
    %p80 = por %p78, %p79
    %p82 = scmp.ne.s32.totalorder %s67, %s81
    %p83 = scmp.eq.s32.totalorder %s15, 0
    %p84 = por %p82, %p83
    %s85 = ssub.s32 %s9, %s16
    %p86 = scmp.eq.s32.totalorder %s85, 0
    %s88 = sadd.s32 %s87, 1
    %s89 = scalar_select %p86, %s87, %s88
    %p92 = pneg %p86
    %p93 = scmp.eq.s32.totalorder %s9, 1
    %p94 = por %p92, %p93
    %p95 = scmp.ne.s32.totalorder %s87, %s90
    %p96 = scmp.eq.s32.totalorder %s9, 0
    %p97 = por %p95, %p96
    %p98 = scmp.ne.s32.totalorder %s87, %s90
    %p99 = scmp.eq.s32.totalorder %s14, 1
    %p100 = por %p98, %p99
    %p101 = scmp.ne.s32.totalorder %s90, %s91
    %p102 = scmp.eq.s32.totalorder %s14, 0
    %p103 = por %p101, %p102
    %p104 = scmp.ne.s32.totalorder %s90, %s91
    %p105 = scmp.eq.s32.totalorder %s15, 1
    %p106 = por %p104, %p105
    %p108 = scmp.ne.s32.totalorder %s91, %s107
    %p109 = scmp.eq.s32.totalorder %s15, 0
    %p110 = por %p108, %p109
    %p111 = scmp.le.s32.totalorder 1, %s9
    %p112 = scmp.lt.s32.totalorder %s9, 3
    %p113 = pnand %p111, %p112
    %p114 = pneg %p113
    // Predicated region
    $region9: #{bottleneck_forward.5} parent=5 // pred_check
      _
    $region10: #{bottleneck_forward.5} parent=5 // pred_check_branch
      %116 = sbr.rel (%p113) target = $region12
    $region11: #{bottleneck_forward.5} parent=5 // pred_region
      %s117 = ssub.s32 %s9, 1
      // Predicated region
      $region13: #{bottleneck_forward.5} parent=11 // pred_check
        %p118 = pneg %p56
      $region14: #{bottleneck_forward.5} parent=11 // pred_check_branch
        %120 = sbr.rel (%p118) target = $region16
      $region15: #{bottleneck_forward.5} parent=11 // pred_region
        _
      $region16: #{bottleneck_forward.5} parent=11 // pred_fallthru
        _
      // Predicated region
      $region17: #{bottleneck_forward.5} parent=11 // pred_check
        %p121 = pneg %p77
      $region18: #{bottleneck_forward.5} parent=11 // pred_check_branch
        %123 = sbr.rel (%p121) target = $region20
      $region19: #{bottleneck_forward.5} parent=11 // pred_region
        _
      $region20: #{bottleneck_forward.5} parent=11 // pred_fallthru
        _
    $region12: #{bottleneck_forward.5} parent=5 // pred_fallthru
      _
    %p124 = scmp.lt.s32.totalorder %s9, 2
    // Predicated region
    $region21: #{bottleneck_forward.5} parent=5 // pred_check
      %p125 = pneg %p124
    $region22: #{bottleneck_forward.5} parent=5 // pred_check_branch
      %127 = sbr.rel (%p125) target = $region24
    $region23: #{bottleneck_forward.5} parent=5 // pred_region
      // Predicated region
      $region25: #{bottleneck_forward.5} parent=23 // pred_check
        %p128 = pneg %p29
      $region26: #{bottleneck_forward.5} parent=23 // pred_check_branch
        %130 = sbr.rel (%p128) target = $region28
      $region27: #{bottleneck_forward.5} parent=23 // pred_region
        %p131 = scmp.lt.s32.totalorder %s9, 1
        %s132 = scalar_select %p131, %s9, 1
        %s133 = smul.addr %s132, 20
        %s134 = smul.addr %s133, 4
        %s135 = scalar_lea.vmem %s0, %s134
      $region28: #{bottleneck_forward.5} parent=23 // pred_fallthru
        _
    $region24: #{bottleneck_forward.5} parent=5 // pred_fallthru
      _
    %p136 = scmp.le.s32.totalorder 1, %s9
    %p137 = scmp.lt.s32.totalorder %s9, 3
    %p138 = pnand %p136, %p137
    %p139 = pneg %p138
    // Predicated region
    $region29: #{bottleneck_forward.5} parent=5 // pred_check
      _
    $region30: #{bottleneck_forward.5} parent=5 // pred_check_branch
      %141 = sbr.rel (%p138) target = $region32
    $region31: #{bottleneck_forward.5} parent=5 // pred_region
      %s142 = ssub.s32 %s9, 1
      %p143 = scmp.lt.s32.totalorder %s14, 1
      %s144 = scalar_select %p143, %s14, 1
      %s145 = smul.addr %s144, 20
      %s146 = smul.addr %s145, 4
      %s147 = scalar_lea.vmem %s0, %s146
      %p148 = pneg %p35
      %p149 = pneg %p32
      %p150 = pneg %p56
      %p151 = pneg %p53
      %p152 = pneg %p77
      %p153 = pneg %p74
      %p154 = pneg %p103
      %p155 = pneg %p100
      %p156 = scmp.lt.s32.totalorder %s14, 1
      %s157 = scalar_select %p156, %s14, 1
      %s158 = smul.addr %s157, 4
      %s159 = smul.addr %s158, 2
      %s160 = scalar_lea.vmem %s3, %s159
      %p161 = scmp.lt.s32.totalorder %s14, 1
      %s162 = scalar_select %p161, %s14, 1
      %s163 = smul.addr %s162, 20
      %s164 = smul.addr %s163, 4
      %s165 = scalar_lea.vmem %s0, %s164
      %p166 = scmp.lt.s32.totalorder %s14, 1
      %s167 = scalar_select %p166, %s14, 1
      %s168 = smul.addr %s167, 4
      %s169 = smul.addr %s168, 2
      %s170 = scalar_lea.vmem %s3, %s169
      %v172 = vld [vmem:[%s165] sm:$0x3]
      %v173 = vld [vmem:[%s165 + $0x4] sm:$0x3]
      %v174 = vld [vmem:[%s165 + $0x8] sm:$0x3]
      %v175 = vld [vmem:[%s165 + $0xc] sm:$0x3]
      %v176 = vld [vmem:[%s1] sm:$0xf]
      %v177 = vld [vmem:[%s1 + $0x4] sm:$0xf]
      %v178 = vld [vmem:[%s1 + $0x8] sm:$0xf]
      %v179 = vld [vmem:[%s1 + $0xc] sm:$0xf]
      %v180 = vld [vmem:[%s1 + $0x10] sm:$0xf]
      %v181 = vld [vmem:[%s1 + $0x14] sm:$0xf]
      %v182 = vld [vmem:[%s1 + $0x18] sm:$0xf]
      %v183 = vld [vmem:[%s1 + $0x1c] sm:$0xf]
      %v184 = vld [vmem:[%s1 + $0x20] sm:$0xf]
      %v185 = vld [vmem:[%s1 + $0x24] sm:$0xf]
      %v186 = vld [vmem:[%s1 + $0x28] sm:$0xf]
      %v187 = vld [vmem:[%s1 + $0x2c] sm:$0xf]
      %v188 = vld [vmem:[%s1 + $0x30] sm:$0xf]
      %v189 = vld [vmem:[%s1 + $0x34] sm:$0xf]
      %v190 = vld [vmem:[%s1 + $0x38] sm:$0xf]
      %v191 = vld [vmem:[%s1 + $0x3c] sm:$0xf]
      %s192 = scalar_lea.vmem %s165, 20
      %v193 = vld [vmem:[%s192] sm:$0x3]
      %v194 = vld [vmem:[%s192 + $0x4] sm:$0x3]
      %v195 = vld [vmem:[%s192 + $0x8] sm:$0x3]
      %v196 = vld [vmem:[%s192 + $0xc] sm:$0x3]
      %s197 = scalar_lea.vmem %s1, 64
      %v198 = vld [vmem:[%s197] sm:$0xf]
      %v199 = vld [vmem:[%s197 + $0x4] sm:$0xf]
      %v200 = vld [vmem:[%s197 + $0x8] sm:$0xf]
      %v201 = vld [vmem:[%s197 + $0xc] sm:$0xf]
      %v202 = vld [vmem:[%s197 + $0x10] sm:$0xf]
      %v203 = vld [vmem:[%s197 + $0x14] sm:$0xf]
      %v204 = vld [vmem:[%s197 + $0x18] sm:$0xf]
      %v205 = vld [vmem:[%s197 + $0x1c] sm:$0xf]
      %v206 = vld [vmem:[%s197 + $0x20] sm:$0xf]
      %v207 = vld [vmem:[%s197 + $0x24] sm:$0xf]
      %v208 = vld [vmem:[%s197 + $0x28] sm:$0xf]
      %v209 = vld [vmem:[%s197 + $0x2c] sm:$0xf]
      %v210 = vld [vmem:[%s197 + $0x30] sm:$0xf]
      %v211 = vld [vmem:[%s197 + $0x34] sm:$0xf]
      %v212 = vld [vmem:[%s197 + $0x38] sm:$0xf]
      %v213 = vld [vmem:[%s197 + $0x3c] sm:$0xf]
      %v218 = vcombine.low %v193, %v194
      %v219 = vcombine.low %v195, %v196
      %v221 = vunpack.c.l.s4 1983009808
      %v222 = vunpack.c.0.s8 %v221
      %v223 = vlaneseq
      %v224 = vshrl.u32 %v223, 7
      %v225 = vsub.s32 %v222, %v224
      %v226 = vrot.slane %v218, %v225
      %v228 = vunpack.c.l.s4 1983009808
      %v229 = vunpack.c.0.s8 %v228
      %v230 = vlaneseq
      %v231 = vshrl.u32 %v230, 7
      %v232 = vsub.s32 %v229, %v231
      %v233 = vrot.slane %v219, %v232
      %v234 = vcombine.low %v226, %v233
      %v252 = vunpack.c.l.b16 %v198
      %v253 = vunpack.c.l.b16 %v199
      %v254 = vunpack.c.l.b16 %v200
      %v255 = vunpack.c.l.b16 %v201
      %v256 = vunpack.c.l.b16 %v202
      %v257 = vunpack.c.l.b16 %v203
      %v258 = vunpack.c.l.b16 %v204
      %v259 = vunpack.c.l.b16 %v205
      %v260 = vunpack.c.l.b16 %v206
      %v261 = vunpack.c.l.b16 %v207
      %v262 = vunpack.c.l.b16 %v208
      %v263 = vunpack.c.l.b16 %v209
      %v264 = vunpack.c.l.b16 %v210
      %v265 = vunpack.c.l.b16 %v211
      %v266 = vunpack.c.l.b16 %v212
      %v267 = vunpack.c.l.b16 %v213
      %v268 = vpack.c.b16 %v253, %v252
      %v269 = vpack.c.b16 %v255, %v254
      %v270 = vpack.c.b16 %v257, %v256
      %v271 = vpack.c.b16 %v259, %v258
      %v272 = vpack.c.b16 %v261, %v260
      %v273 = vpack.c.b16 %v263, %v262
      %v274 = vpack.c.b16 %v265, %v264
      %v275 = vpack.c.b16 %v267, %v266
      %284 = vmatprep.subr.bf16.mxu0 0
      %285 = vmatpush1.bf16.msra.mxu0 %v275
      %286 = vmatprep.subr.bf16.mxu0 0
      %287 = vmatpush1.bf16.msra.mxu0 %v274
      %288 = vmatprep.subr.bf16.mxu0 0
      %289 = vmatpush1.bf16.msra.mxu0 %v273
      %290 = vmatprep.subr.bf16.mxu0 0
      %291 = vmatpush1.bf16.msra.mxu0 %v272
      %292 = vmatprep.subr.bf16.mxu0 0
      %293 = vmatpush1.bf16.msra.mxu0 %v271
      %294 = vmatprep.subr.bf16.mxu0 0
      %295 = vmatpush1.bf16.msra.mxu0 %v270
      %296 = vmatprep.subr.bf16.mxu0 0
      %297 = vmatpush1.bf16.msra.mxu0 %v269
      %298 = vmatprep.subr.bf16.mxu0 0
      %299 = vmatpush1.bf16.msra.mxu0 %v268
      %300 = vmatprep.subr.bf16.mxu0 0
      %301 = vmatpush2.bf16.msra.mxu0 0
      %302 = vmatprep.subr.bf16.mxu0 0
      %303 = vmatpush2.bf16.msra.mxu0 0
      %304 = vmatprep.subr.bf16.mxu0 0
      %305 = vmatpush2.bf16.msra.mxu0 0
      %306 = vmatprep.subr.bf16.mxu0 0
      %307 = vmatpush2.bf16.msra.mxu0 0
      %308 = vmatprep.subr.bf16.mxu0 0
      %309 = vmatpush2.bf16.msra.mxu0 0
      %310 = vmatprep.subr.bf16.mxu0 0
      %311 = vmatpush2.bf16.msra.mxu0 0
      %312 = vmatprep.subr.bf16.mxu0 0
      %313 = vmatpush2.bf16.msra.mxu0 0
      %314 = vmatprep.subr.bf16.mxu0 0
      %315 = vmatpush2.bf16.msra.mxu0 0
      %316 = vmatprep.mubr.bf16.mxu0 0
      %317 = vmatmul.mubr.bf16.gmra.mxu0 %v234
      %v318 = vpop.f32.mrf.mxu0
      %v319 = vadd.f32 0.0, %v318
      %v320 = vpop.f32.mrf.mxu0
      %v321 = vpop.f32.mrf.mxu0
      %v322 = vadd.f32 0.0, %v321
      %v323 = vpop.f32.mrf.mxu0
      %324 = vdwg.mxu0
      %v329 = vcombine.low %v172, %v173
      %v330 = vcombine.low %v174, %v175
      %v332 = vunpack.c.l.s4 1983009808
      %v333 = vunpack.c.0.s8 %v332
      %v334 = vlaneseq
      %v335 = vshrl.u32 %v334, 7
      %v336 = vsub.s32 %v333, %v335
      %v337 = vrot.slane %v329, %v336
      %v339 = vunpack.c.l.s4 1983009808
      %v340 = vunpack.c.0.s8 %v339
      %v341 = vlaneseq
      %v342 = vshrl.u32 %v341, 7
      %v343 = vsub.s32 %v340, %v342
      %v344 = vrot.slane %v330, %v343
      %v345 = vcombine.low %v337, %v344
      %v363 = vunpack.c.l.b16 %v176
      %v364 = vunpack.c.l.b16 %v177
      %v365 = vunpack.c.l.b16 %v178
      %v366 = vunpack.c.l.b16 %v179
      %v367 = vunpack.c.l.b16 %v180
      %v368 = vunpack.c.l.b16 %v181
      %v369 = vunpack.c.l.b16 %v182
      %v370 = vunpack.c.l.b16 %v183
      %v371 = vunpack.c.l.b16 %v184
      %v372 = vunpack.c.l.b16 %v185
      %v373 = vunpack.c.l.b16 %v186
      %v374 = vunpack.c.l.b16 %v187
      %v375 = vunpack.c.l.b16 %v188
      %v376 = vunpack.c.l.b16 %v189
      %v377 = vunpack.c.l.b16 %v190
      %v378 = vunpack.c.l.b16 %v191
      %v379 = vpack.c.b16 %v364, %v363
      %v380 = vpack.c.b16 %v366, %v365
      %v381 = vpack.c.b16 %v368, %v367
      %v382 = vpack.c.b16 %v370, %v369
      %v383 = vpack.c.b16 %v372, %v371
      %v384 = vpack.c.b16 %v374, %v373
      %v385 = vpack.c.b16 %v376, %v375
      %v386 = vpack.c.b16 %v378, %v377
      %395 = vmatprep.subr.bf16.mxu0 0
      %396 = vmatpush1.bf16.msra.mxu0 %v386
      %397 = vmatprep.subr.bf16.mxu0 0
      %398 = vmatpush1.bf16.msra.mxu0 %v385
      %399 = vmatprep.subr.bf16.mxu0 0
      %400 = vmatpush1.bf16.msra.mxu0 %v384
      %401 = vmatprep.subr.bf16.mxu0 0
      %402 = vmatpush1.bf16.msra.mxu0 %v383
      %403 = vmatprep.subr.bf16.mxu0 0
      %404 = vmatpush1.bf16.msra.mxu0 %v382
      %405 = vmatprep.subr.bf16.mxu0 0
      %406 = vmatpush1.bf16.msra.mxu0 %v381
      %407 = vmatprep.subr.bf16.mxu0 0
      %408 = vmatpush1.bf16.msra.mxu0 %v380
      %409 = vmatprep.subr.bf16.mxu0 0
      %410 = vmatpush1.bf16.msra.mxu0 %v379
      %411 = vmatprep.subr.bf16.mxu0 0
      %412 = vmatpush2.bf16.msra.mxu0 0
      %413 = vmatprep.subr.bf16.mxu0 0
      %414 = vmatpush2.bf16.msra.mxu0 0
      %415 = vmatprep.subr.bf16.mxu0 0
      %416 = vmatpush2.bf16.msra.mxu0 0
      %417 = vmatprep.subr.bf16.mxu0 0
      %418 = vmatpush2.bf16.msra.mxu0 0
      %419 = vmatprep.subr.bf16.mxu0 0
      %420 = vmatpush2.bf16.msra.mxu0 0
      %421 = vmatprep.subr.bf16.mxu0 0
      %422 = vmatpush2.bf16.msra.mxu0 0
      %423 = vmatprep.subr.bf16.mxu0 0
      %424 = vmatpush2.bf16.msra.mxu0 0
      %425 = vmatprep.subr.bf16.mxu0 0
      %426 = vmatpush2.bf16.msra.mxu0 0
      %427 = vmatprep.mubr.bf16.mxu0 0
      %428 = vmatmul.mubr.bf16.gmra.mxu0 %v345
      %v429 = vpop.f32.mrf.mxu0
      %v430 = vadd.f32 %v319, %v429
      %v431 = vpop.f32.mrf.mxu0
      %v432 = vpop.f32.mrf.mxu0
      %v433 = vadd.f32 %v322, %v432
      %v434 = vpop.f32.mrf.mxu0
      %435 = vdwg.mxu0
      %v436 = vld [vmem:[%s165] sm:$0x7]
      %v437 = vld [vmem:[%s165 + $0x4] sm:$0x7]
      %v438 = vld [vmem:[%s165 + $0x8] sm:$0x7]
      %v439 = vld [vmem:[%s165 + $0xc] sm:$0x7]
      %v445 = vunpack.c.l.s4 1983009808
      %v446 = vunpack.c.0.s8 %v445
      %v447 = vlaneseq
      %v448 = vshrl.u32 %v447, 7
      %v449 = vsub.s32 %v446, %v448
      %v450 = vrot.slane %v436, %v449
      %v451 = vcombine.high %v450, %v450
      %v453 = vunpack.c.l.s4 1983009808
      %v454 = vunpack.c.0.s8 %v453
      %v455 = vlaneseq
      %v456 = vshrl.u32 %v455, 7
      %v457 = vsub.s32 %v454, %v456
      %v458 = vrot.slane %v437, %v457
      %v459 = vcombine.high %v458, %v458
      %v461 = vunpack.c.l.s4 1983009808
      %v462 = vunpack.c.0.s8 %v461
      %v463 = vlaneseq
      %v464 = vshrl.u32 %v463, 7
      %v465 = vsub.s32 %v462, %v464
      %v466 = vrot.slane %v438, %v465
      %v467 = vcombine.high %v466, %v466
      %v469 = vunpack.c.l.s4 1983009808
      %v470 = vunpack.c.0.s8 %v469
      %v471 = vlaneseq
      %v472 = vshrl.u32 %v471, 7
      %v473 = vsub.s32 %v470, %v472
      %v474 = vrot.slane %v439, %v473
      %v475 = vcombine.high %v474, %v474
      %vm476 = vsmask.f32 1280
      %vm477 = vsmask.f32 3336
      %vm478 = vmor %vm476, %vm477
      %vm479 = vsmask.f32 5392
      %vm480 = vmor %vm478, %vm479
      %vm481 = vsmask.f32 7448
      %vm482 = vmor %vm480, %vm481
      %v484 = vshrl.u32 %v450, 16
      %v486 = vrot.slane %v484, 6
      %v487 = vshll.u32 %v450, 16
      %v489 = vrot.slane %v487, 7
      %v490 = vor.u32 %v486, %v489
      %v491 = vrot.slane %v490, 2
      %v493 = vshll.u32 %v451, 16
      %v495 = vrot.slane %v493, 7
      %v496 = vsel %vm482, %v491, %v495
      %v498 = vshrl.u32 %v458, 16
      %v500 = vrot.slane %v498, 6
      %v501 = vshll.u32 %v458, 16
      %v503 = vrot.slane %v501, 7
      %v504 = vor.u32 %v500, %v503
      %v505 = vrot.slane %v504, 2
      %v507 = vshll.u32 %v459, 16
      %v509 = vrot.slane %v507, 7
      %v510 = vsel %vm482, %v505, %v509
      %v512 = vshrl.u32 %v466, 16
      %v514 = vrot.slane %v512, 6
      %v515 = vshll.u32 %v466, 16
      %v517 = vrot.slane %v515, 7
      %v518 = vor.u32 %v514, %v517
      %v519 = vrot.slane %v518, 2
      %v521 = vshll.u32 %v467, 16
      %v523 = vrot.slane %v521, 7
      %v524 = vsel %vm482, %v519, %v523
      %v526 = vshrl.u32 %v474, 16
      %v528 = vrot.slane %v526, 6
      %v529 = vshll.u32 %v474, 16
      %v531 = vrot.slane %v529, 7
      %v532 = vor.u32 %v528, %v531
      %v533 = vrot.slane %v532, 2
      %v535 = vshll.u32 %v475, 16
      %v537 = vrot.slane %v535, 7
      %v538 = vsel %vm482, %v533, %v537
      %s539 = scalar_lea.vmem %s1, 128
      %v540 = vld [vmem:[%s539] sm:$0xf]
      %v541 = vld [vmem:[%s539 + $0x4] sm:$0xf]
      %v542 = vld [vmem:[%s539 + $0x8] sm:$0xf]
      %v543 = vld [vmem:[%s539 + $0xc] sm:$0xf]
      %v544 = vld [vmem:[%s539 + $0x10] sm:$0xf]
      %v545 = vld [vmem:[%s539 + $0x14] sm:$0xf]
      %v546 = vld [vmem:[%s539 + $0x18] sm:$0xf]
      %v547 = vld [vmem:[%s539 + $0x1c] sm:$0xf]
      %v548 = vld [vmem:[%s539 + $0x20] sm:$0xf]
      %v549 = vld [vmem:[%s539 + $0x24] sm:$0xf]
      %v550 = vld [vmem:[%s539 + $0x28] sm:$0xf]
      %v551 = vld [vmem:[%s539 + $0x2c] sm:$0xf]
      %v552 = vld [vmem:[%s539 + $0x30] sm:$0xf]
      %v553 = vld [vmem:[%s539 + $0x34] sm:$0xf]
      %v554 = vld [vmem:[%s539 + $0x38] sm:$0xf]
      %v555 = vld [vmem:[%s539 + $0x3c] sm:$0xf]
      %v556 = vcombine.low %v496, %v510
      %v557 = vcombine.low %v524, %v538
      %v559 = vunpack.c.l.s4 1983009808
      %v560 = vunpack.c.0.s8 %v559
      %v561 = vlaneseq
      %v562 = vshrl.u32 %v561, 7
      %v563 = vsub.s32 %v560, %v562
      %v564 = vrot.slane %v556, %v563
      %v566 = vunpack.c.l.s4 1983009808
      %v567 = vunpack.c.0.s8 %v566
      %v568 = vlaneseq
      %v569 = vshrl.u32 %v568, 7
      %v570 = vsub.s32 %v567, %v569
      %v571 = vrot.slane %v557, %v570
      %v572 = vcombine.low %v564, %v571
      %v590 = vunpack.c.l.b16 %v540
      %v591 = vunpack.c.l.b16 %v541
      %v592 = vunpack.c.l.b16 %v542
      %v593 = vunpack.c.l.b16 %v543
      %v594 = vunpack.c.l.b16 %v544
      %v595 = vunpack.c.l.b16 %v545
      %v596 = vunpack.c.l.b16 %v546
      %v597 = vunpack.c.l.b16 %v547
      %v598 = vunpack.c.l.b16 %v548
      %v599 = vunpack.c.l.b16 %v549
      %v600 = vunpack.c.l.b16 %v550
      %v601 = vunpack.c.l.b16 %v551
      %v602 = vunpack.c.l.b16 %v552
      %v603 = vunpack.c.l.b16 %v553
      %v604 = vunpack.c.l.b16 %v554
      %v605 = vunpack.c.l.b16 %v555
      %v606 = vpack.c.b16 %v591, %v590
      %v607 = vpack.c.b16 %v593, %v592
      %v608 = vpack.c.b16 %v595, %v594
      %v609 = vpack.c.b16 %v597, %v596
      %v610 = vpack.c.b16 %v599, %v598
      %v611 = vpack.c.b16 %v601, %v600
      %v612 = vpack.c.b16 %v603, %v602
      %v613 = vpack.c.b16 %v605, %v604
      %622 = vmatprep.subr.bf16.mxu0 0
      %623 = vmatpush1.bf16.msra.mxu0 %v613
      %624 = vmatprep.subr.bf16.mxu0 0
      %625 = vmatpush1.bf16.msra.mxu0 %v612
      %626 = vmatprep.subr.bf16.mxu0 0
      %627 = vmatpush1.bf16.msra.mxu0 %v611
      %628 = vmatprep.subr.bf16.mxu0 0
      %629 = vmatpush1.bf16.msra.mxu0 %v610
      %630 = vmatprep.subr.bf16.mxu0 0
      %631 = vmatpush1.bf16.msra.mxu0 %v609
      %632 = vmatprep.subr.bf16.mxu0 0
      %633 = vmatpush1.bf16.msra.mxu0 %v608
      %634 = vmatprep.subr.bf16.mxu0 0
      %635 = vmatpush1.bf16.msra.mxu0 %v607
      %636 = vmatprep.subr.bf16.mxu0 0
      %637 = vmatpush1.bf16.msra.mxu0 %v606
      %638 = vmatprep.subr.bf16.mxu0 0
      %639 = vmatpush2.bf16.msra.mxu0 0
      %640 = vmatprep.subr.bf16.mxu0 0
      %641 = vmatpush2.bf16.msra.mxu0 0
      %642 = vmatprep.subr.bf16.mxu0 0
      %643 = vmatpush2.bf16.msra.mxu0 0
      %644 = vmatprep.subr.bf16.mxu0 0
      %645 = vmatpush2.bf16.msra.mxu0 0
      %646 = vmatprep.subr.bf16.mxu0 0
      %647 = vmatpush2.bf16.msra.mxu0 0
      %648 = vmatprep.subr.bf16.mxu0 0
      %649 = vmatpush2.bf16.msra.mxu0 0
      %650 = vmatprep.subr.bf16.mxu0 0
      %651 = vmatpush2.bf16.msra.mxu0 0
      %652 = vmatprep.subr.bf16.mxu0 0
      %653 = vmatpush2.bf16.msra.mxu0 0
      %654 = vmatprep.mubr.bf16.mxu0 0
      %655 = vmatmul.mubr.bf16.gmra.mxu0 %v572
      %v656 = vpop.f32.mrf.mxu0
      %v657 = vadd.f32 0.0, %v656
      %v658 = vpop.f32.mrf.mxu0
      %v659 = vpop.f32.mrf.mxu0
      %v660 = vadd.f32 0.0, %v659
      %v661 = vpop.f32.mrf.mxu0
      %662 = vdwg.mxu0
      %v663 = vadd.f32 %v430, %v657
      %v664 = vadd.f32 %v433, %v660
      %s665 = scalar_lea.vmem %s165, 40
      %v666 = vld [vmem:[%s665] sm:$0x3]
      %v667 = vld [vmem:[%s665 + $0x4] sm:$0x3]
      %v668 = vld [vmem:[%s665 + $0x8] sm:$0x3]
      %v669 = vld [vmem:[%s665 + $0xc] sm:$0x3]
      %s670 = scalar_lea.vmem %s1, 192
      %v671 = vld [vmem:[%s670] sm:$0xf]
      %v672 = vld [vmem:[%s670 + $0x4] sm:$0xf]
      %v673 = vld [vmem:[%s670 + $0x8] sm:$0xf]
      %v674 = vld [vmem:[%s670 + $0xc] sm:$0xf]
      %v675 = vld [vmem:[%s670 + $0x10] sm:$0xf]
      %v676 = vld [vmem:[%s670 + $0x14] sm:$0xf]
      %v677 = vld [vmem:[%s670 + $0x18] sm:$0xf]
      %v678 = vld [vmem:[%s670 + $0x1c] sm:$0xf]
      %v679 = vld [vmem:[%s670 + $0x20] sm:$0xf]
      %v680 = vld [vmem:[%s670 + $0x24] sm:$0xf]
      %v681 = vld [vmem:[%s670 + $0x28] sm:$0xf]
      %v682 = vld [vmem:[%s670 + $0x2c] sm:$0xf]
      %v683 = vld [vmem:[%s670 + $0x30] sm:$0xf]
      %v684 = vld [vmem:[%s670 + $0x34] sm:$0xf]
      %v685 = vld [vmem:[%s670 + $0x38] sm:$0xf]
      %v686 = vld [vmem:[%s670 + $0x3c] sm:$0xf]
      %v691 = vcombine.low %v666, %v667
      %v692 = vcombine.low %v668, %v669
      %v694 = vunpack.c.l.s4 1983009808
      %v695 = vunpack.c.0.s8 %v694
      %v696 = vlaneseq
      %v697 = vshrl.u32 %v696, 7
      %v698 = vsub.s32 %v695, %v697
      %v699 = vrot.slane %v691, %v698
      %v701 = vunpack.c.l.s4 1983009808
      %v702 = vunpack.c.0.s8 %v701
      %v703 = vlaneseq
      %v704 = vshrl.u32 %v703, 7
      %v705 = vsub.s32 %v702, %v704
      %v706 = vrot.slane %v692, %v705
      %v707 = vcombine.low %v699, %v706
      %v725 = vunpack.c.l.b16 %v671
      %v726 = vunpack.c.l.b16 %v672
      %v727 = vunpack.c.l.b16 %v673
      %v728 = vunpack.c.l.b16 %v674
      %v729 = vunpack.c.l.b16 %v675
      %v730 = vunpack.c.l.b16 %v676
      %v731 = vunpack.c.l.b16 %v677
      %v732 = vunpack.c.l.b16 %v678
      %v733 = vunpack.c.l.b16 %v679
      %v734 = vunpack.c.l.b16 %v680
      %v735 = vunpack.c.l.b16 %v681
      %v736 = vunpack.c.l.b16 %v682
      %v737 = vunpack.c.l.b16 %v683
      %v738 = vunpack.c.l.b16 %v684
      %v739 = vunpack.c.l.b16 %v685
      %v740 = vunpack.c.l.b16 %v686
      %v741 = vpack.c.b16 %v726, %v725
      %v742 = vpack.c.b16 %v728, %v727
      %v743 = vpack.c.b16 %v730, %v729
      %v744 = vpack.c.b16 %v732, %v731
      %v745 = vpack.c.b16 %v734, %v733
      %v746 = vpack.c.b16 %v736, %v735
      %v747 = vpack.c.b16 %v738, %v737
      %v748 = vpack.c.b16 %v740, %v739
      %757 = vmatprep.subr.bf16.mxu0 0
      %758 = vmatpush1.bf16.msra.mxu0 %v748
      %759 = vmatprep.subr.bf16.mxu0 0
      %760 = vmatpush1.bf16.msra.mxu0 %v747
      %761 = vmatprep.subr.bf16.mxu0 0
      %762 = vmatpush1.bf16.msra.mxu0 %v746
      %763 = vmatprep.subr.bf16.mxu0 0
      %764 = vmatpush1.bf16.msra.mxu0 %v745
      %765 = vmatprep.subr.bf16.mxu0 0
      %766 = vmatpush1.bf16.msra.mxu0 %v744
      %767 = vmatprep.subr.bf16.mxu0 0
      %768 = vmatpush1.bf16.msra.mxu0 %v743
      %769 = vmatprep.subr.bf16.mxu0 0
      %770 = vmatpush1.bf16.msra.mxu0 %v742
      %771 = vmatprep.subr.bf16.mxu0 0
      %772 = vmatpush1.bf16.msra.mxu0 %v741
      %773 = vmatprep.subr.bf16.mxu0 0
      %774 = vmatpush2.bf16.msra.mxu0 0
      %775 = vmatprep.subr.bf16.mxu0 0
      %776 = vmatpush2.bf16.msra.mxu0 0
      %777 = vmatprep.subr.bf16.mxu0 0
      %778 = vmatpush2.bf16.msra.mxu0 0
      %779 = vmatprep.subr.bf16.mxu0 0
      %780 = vmatpush2.bf16.msra.mxu0 0
      %781 = vmatprep.subr.bf16.mxu0 0
      %782 = vmatpush2.bf16.msra.mxu0 0
      %783 = vmatprep.subr.bf16.mxu0 0
      %784 = vmatpush2.bf16.msra.mxu0 0
      %785 = vmatprep.subr.bf16.mxu0 0
      %786 = vmatpush2.bf16.msra.mxu0 0
      %787 = vmatprep.subr.bf16.mxu0 0
      %788 = vmatpush2.bf16.msra.mxu0 0
      %789 = vmatprep.mubr.bf16.mxu0 0
      %790 = vmatmul.mubr.bf16.gmra.mxu0 %v707
      %v791 = vpop.f32.mrf.mxu0
      %v792 = vadd.f32 0.0, %v791
      %v793 = vpop.f32.mrf.mxu0
      %v794 = vpop.f32.mrf.mxu0
      %v795 = vadd.f32 0.0, %v794
      %v796 = vpop.f32.mrf.mxu0
      %797 = vdwg.mxu0
      %v798 = vadd.f32 %v663, %v792
      %v799 = vadd.f32 %v664, %v795
      %s800 = scalar_lea.vmem %s165, 60
      %v801 = vld [vmem:[%s800] sm:$0x3]
      %v802 = vld [vmem:[%s800 + $0x4] sm:$0x3]
      %v803 = vld [vmem:[%s800 + $0x8] sm:$0x3]
      %v804 = vld [vmem:[%s800 + $0xc] sm:$0x3]
      %s805 = scalar_lea.vmem %s1, 256
      %v806 = vld [vmem:[%s805] sm:$0xf]
      %v807 = vld [vmem:[%s805 + $0x4] sm:$0xf]
      %v808 = vld [vmem:[%s805 + $0x8] sm:$0xf]
      %v809 = vld [vmem:[%s805 + $0xc] sm:$0xf]
      %v810 = vld [vmem:[%s805 + $0x10] sm:$0xf]
      %v811 = vld [vmem:[%s805 + $0x14] sm:$0xf]
      %v812 = vld [vmem:[%s805 + $0x18] sm:$0xf]
      %v813 = vld [vmem:[%s805 + $0x1c] sm:$0xf]
      %v814 = vld [vmem:[%s805 + $0x20] sm:$0xf]
      %v815 = vld [vmem:[%s805 + $0x24] sm:$0xf]
      %v816 = vld [vmem:[%s805 + $0x28] sm:$0xf]
      %v817 = vld [vmem:[%s805 + $0x2c] sm:$0xf]
      %v818 = vld [vmem:[%s805 + $0x30] sm:$0xf]
      %v819 = vld [vmem:[%s805 + $0x34] sm:$0xf]
      %v820 = vld [vmem:[%s805 + $0x38] sm:$0xf]
      %v821 = vld [vmem:[%s805 + $0x3c] sm:$0xf]
      %v826 = vcombine.low %v801, %v802
      %v827 = vcombine.low %v803, %v804
      %v829 = vunpack.c.l.s4 1983009808
      %v830 = vunpack.c.0.s8 %v829
      %v831 = vlaneseq
      %v832 = vshrl.u32 %v831, 7
      %v833 = vsub.s32 %v830, %v832
      %v834 = vrot.slane %v826, %v833
      %v836 = vunpack.c.l.s4 1983009808
      %v837 = vunpack.c.0.s8 %v836
      %v838 = vlaneseq
      %v839 = vshrl.u32 %v838, 7
      %v840 = vsub.s32 %v837, %v839
      %v841 = vrot.slane %v827, %v840
      %v842 = vcombine.low %v834, %v841
      %v860 = vunpack.c.l.b16 %v806
      %v861 = vunpack.c.l.b16 %v807
      %v862 = vunpack.c.l.b16 %v808
      %v863 = vunpack.c.l.b16 %v809
      %v864 = vunpack.c.l.b16 %v810
      %v865 = vunpack.c.l.b16 %v811
      %v866 = vunpack.c.l.b16 %v812
      %v867 = vunpack.c.l.b16 %v813
      %v868 = vunpack.c.l.b16 %v814
      %v869 = vunpack.c.l.b16 %v815
      %v870 = vunpack.c.l.b16 %v816
      %v871 = vunpack.c.l.b16 %v817
      %v872 = vunpack.c.l.b16 %v818
      %v873 = vunpack.c.l.b16 %v819
      %v874 = vunpack.c.l.b16 %v820
      %v875 = vunpack.c.l.b16 %v821
      %v876 = vpack.c.b16 %v861, %v860
      %v877 = vpack.c.b16 %v863, %v862
      %v878 = vpack.c.b16 %v865, %v864
      %v879 = vpack.c.b16 %v867, %v866
      %v880 = vpack.c.b16 %v869, %v868
      %v881 = vpack.c.b16 %v871, %v870
      %v882 = vpack.c.b16 %v873, %v872
      %v883 = vpack.c.b16 %v875, %v874
      %892 = vmatprep.subr.bf16.mxu0 0
      %893 = vmatpush1.bf16.msra.mxu0 %v883
      %894 = vmatprep.subr.bf16.mxu0 0
      %895 = vmatpush1.bf16.msra.mxu0 %v882
      %896 = vmatprep.subr.bf16.mxu0 0
      %897 = vmatpush1.bf16.msra.mxu0 %v881
      %898 = vmatprep.subr.bf16.mxu0 0
      %899 = vmatpush1.bf16.msra.mxu0 %v880
      %900 = vmatprep.subr.bf16.mxu0 0
      %901 = vmatpush1.bf16.msra.mxu0 %v879
      %902 = vmatprep.subr.bf16.mxu0 0
      %903 = vmatpush1.bf16.msra.mxu0 %v878
      %904 = vmatprep.subr.bf16.mxu0 0
      %905 = vmatpush1.bf16.msra.mxu0 %v877
      %906 = vmatprep.subr.bf16.mxu0 0
      %907 = vmatpush1.bf16.msra.mxu0 %v876
      %908 = vmatprep.subr.bf16.mxu0 0
      %909 = vmatpush2.bf16.msra.mxu0 0
      %910 = vmatprep.subr.bf16.mxu0 0
      %911 = vmatpush2.bf16.msra.mxu0 0
      %912 = vmatprep.subr.bf16.mxu0 0
      %913 = vmatpush2.bf16.msra.mxu0 0
      %914 = vmatprep.subr.bf16.mxu0 0
      %915 = vmatpush2.bf16.msra.mxu0 0
      %916 = vmatprep.subr.bf16.mxu0 0
      %917 = vmatpush2.bf16.msra.mxu0 0
      %918 = vmatprep.subr.bf16.mxu0 0
      %919 = vmatpush2.bf16.msra.mxu0 0
      %920 = vmatprep.subr.bf16.mxu0 0
      %921 = vmatpush2.bf16.msra.mxu0 0
      %922 = vmatprep.subr.bf16.mxu0 0
      %923 = vmatpush2.bf16.msra.mxu0 0
      %924 = vmatprep.mubr.bf16.mxu0 0
      %925 = vmatmul.mubr.bf16.gmra.mxu0 %v842
      %v926 = vpop.f32.mrf.mxu0
      %v927 = vadd.f32 0.0, %v926
      %v928 = vpop.f32.mrf.mxu0
      %v929 = vpop.f32.mrf.mxu0
      %v930 = vadd.f32 0.0, %v929
      %v931 = vpop.f32.mrf.mxu0
      %932 = vdwg.mxu0
      %v933 = vadd.f32 %v798, %v927
      %v934 = vadd.f32 %v799, %v930
      %v935 = vld [vmem:[%s665] sm:$0x7]
      %v936 = vld [vmem:[%s665 + $0x4] sm:$0x7]
      %v937 = vld [vmem:[%s665 + $0x8] sm:$0x7]
      %v938 = vld [vmem:[%s665 + $0xc] sm:$0x7]
      %v944 = vunpack.c.l.s4 1983009808
      %v945 = vunpack.c.0.s8 %v944
      %v946 = vlaneseq
      %v947 = vshrl.u32 %v946, 7
      %v948 = vsub.s32 %v945, %v947
      %v949 = vrot.slane %v935, %v948
      %v950 = vcombine.high %v949, %v949
      %v952 = vunpack.c.l.s4 1983009808
      %v953 = vunpack.c.0.s8 %v952
      %v954 = vlaneseq
      %v955 = vshrl.u32 %v954, 7
      %v956 = vsub.s32 %v953, %v955
      %v957 = vrot.slane %v936, %v956
      %v958 = vcombine.high %v957, %v957
      %v960 = vunpack.c.l.s4 1983009808
      %v961 = vunpack.c.0.s8 %v960
      %v962 = vlaneseq
      %v963 = vshrl.u32 %v962, 7
      %v964 = vsub.s32 %v961, %v963
      %v965 = vrot.slane %v937, %v964
      %v966 = vcombine.high %v965, %v965
      %v968 = vunpack.c.l.s4 1983009808
      %v969 = vunpack.c.0.s8 %v968
      %v970 = vlaneseq
      %v971 = vshrl.u32 %v970, 7
      %v972 = vsub.s32 %v969, %v971
      %v973 = vrot.slane %v938, %v972
      %v974 = vcombine.high %v973, %v973
      %v976 = vshrl.u32 %v949, 16
      %v978 = vrot.slane %v976, 6
      %v979 = vshll.u32 %v949, 16
      %v981 = vrot.slane %v979, 7
      %v982 = vor.u32 %v978, %v981
      %v983 = vrot.slane %v982, 2
      %v985 = vshll.u32 %v950, 16
      %v987 = vrot.slane %v985, 7
      %v988 = vsel %vm482, %v983, %v987
      %v990 = vshrl.u32 %v957, 16
      %v992 = vrot.slane %v990, 6
      %v993 = vshll.u32 %v957, 16
      %v995 = vrot.slane %v993, 7
      %v996 = vor.u32 %v992, %v995
      %v997 = vrot.slane %v996, 2
      %v999 = vshll.u32 %v958, 16
      %v1001 = vrot.slane %v999, 7
      %v1002 = vsel %vm482, %v997, %v1001
      %v1004 = vshrl.u32 %v965, 16
      %v1006 = vrot.slane %v1004, 6
      %v1007 = vshll.u32 %v965, 16
      %v1009 = vrot.slane %v1007, 7
      %v1010 = vor.u32 %v1006, %v1009
      %v1011 = vrot.slane %v1010, 2
      %v1013 = vshll.u32 %v966, 16
      %v1015 = vrot.slane %v1013, 7
      %v1016 = vsel %vm482, %v1011, %v1015
      %v1018 = vshrl.u32 %v973, 16
      %v1020 = vrot.slane %v1018, 6
      %v1021 = vshll.u32 %v973, 16
      %v1023 = vrot.slane %v1021, 7
      %v1024 = vor.u32 %v1020, %v1023
      %v1025 = vrot.slane %v1024, 2
      %v1027 = vshll.u32 %v974, 16
      %v1029 = vrot.slane %v1027, 7
      %v1030 = vsel %vm482, %v1025, %v1029
      %s1031 = scalar_lea.vmem %s1, 320
      %v1032 = vld [vmem:[%s1031] sm:$0xf]
      %v1033 = vld [vmem:[%s1031 + $0x4] sm:$0xf]
      %v1034 = vld [vmem:[%s1031 + $0x8] sm:$0xf]
      %v1035 = vld [vmem:[%s1031 + $0xc] sm:$0xf]
      %v1036 = vld [vmem:[%s1031 + $0x10] sm:$0xf]
      %v1037 = vld [vmem:[%s1031 + $0x14] sm:$0xf]
      %v1038 = vld [vmem:[%s1031 + $0x18] sm:$0xf]
      %v1039 = vld [vmem:[%s1031 + $0x1c] sm:$0xf]
      %v1040 = vld [vmem:[%s1031 + $0x20] sm:$0xf]
      %v1041 = vld [vmem:[%s1031 + $0x24] sm:$0xf]
      %v1042 = vld [vmem:[%s1031 + $0x28] sm:$0xf]
      %v1043 = vld [vmem:[%s1031 + $0x2c] sm:$0xf]
      %v1044 = vld [vmem:[%s1031 + $0x30] sm:$0xf]
      %v1045 = vld [vmem:[%s1031 + $0x34] sm:$0xf]
      %v1046 = vld [vmem:[%s1031 + $0x38] sm:$0xf]
      %v1047 = vld [vmem:[%s1031 + $0x3c] sm:$0xf]
      %v1048 = vcombine.low %v988, %v1002
      %v1049 = vcombine.low %v1016, %v1030
      %v1051 = vunpack.c.l.s4 1983009808
      %v1052 = vunpack.c.0.s8 %v1051
      %v1053 = vlaneseq
      %v1054 = vshrl.u32 %v1053, 7
      %v1055 = vsub.s32 %v1052, %v1054
      %v1056 = vrot.slane %v1048, %v1055
      %v1058 = vunpack.c.l.s4 1983009808
      %v1059 = vunpack.c.0.s8 %v1058
      %v1060 = vlaneseq
      %v1061 = vshrl.u32 %v1060, 7
      %v1062 = vsub.s32 %v1059, %v1061
      %v1063 = vrot.slane %v1049, %v1062
      %v1064 = vcombine.low %v1056, %v1063
      %v1082 = vunpack.c.l.b16 %v1032
      %v1083 = vunpack.c.l.b16 %v1033
      %v1084 = vunpack.c.l.b16 %v1034
      %v1085 = vunpack.c.l.b16 %v1035
      %v1086 = vunpack.c.l.b16 %v1036
      %v1087 = vunpack.c.l.b16 %v1037
      %v1088 = vunpack.c.l.b16 %v1038
      %v1089 = vunpack.c.l.b16 %v1039
      %v1090 = vunpack.c.l.b16 %v1040
      %v1091 = vunpack.c.l.b16 %v1041
      %v1092 = vunpack.c.l.b16 %v1042
      %v1093 = vunpack.c.l.b16 %v1043
      %v1094 = vunpack.c.l.b16 %v1044
      %v1095 = vunpack.c.l.b16 %v1045
      %v1096 = vunpack.c.l.b16 %v1046
      %v1097 = vunpack.c.l.b16 %v1047
      %v1098 = vpack.c.b16 %v1083, %v1082
      %v1099 = vpack.c.b16 %v1085, %v1084
      %v1100 = vpack.c.b16 %v1087, %v1086
      %v1101 = vpack.c.b16 %v1089, %v1088
      %v1102 = vpack.c.b16 %v1091, %v1090
      %v1103 = vpack.c.b16 %v1093, %v1092
      %v1104 = vpack.c.b16 %v1095, %v1094
      %v1105 = vpack.c.b16 %v1097, %v1096
      %1114 = vmatprep.subr.bf16.mxu0 0
      %1115 = vmatpush1.bf16.msra.mxu0 %v1105
      %1116 = vmatprep.subr.bf16.mxu0 0
      %1117 = vmatpush1.bf16.msra.mxu0 %v1104
      %1118 = vmatprep.subr.bf16.mxu0 0
      %1119 = vmatpush1.bf16.msra.mxu0 %v1103
      %1120 = vmatprep.subr.bf16.mxu0 0
      %1121 = vmatpush1.bf16.msra.mxu0 %v1102
      %1122 = vmatprep.subr.bf16.mxu0 0
      %1123 = vmatpush1.bf16.msra.mxu0 %v1101
      %1124 = vmatprep.subr.bf16.mxu0 0
      %1125 = vmatpush1.bf16.msra.mxu0 %v1100
      %1126 = vmatprep.subr.bf16.mxu0 0
      %1127 = vmatpush1.bf16.msra.mxu0 %v1099
      %1128 = vmatprep.subr.bf16.mxu0 0
      %1129 = vmatpush1.bf16.msra.mxu0 %v1098
      %1130 = vmatprep.subr.bf16.mxu0 0
      %1131 = vmatpush2.bf16.msra.mxu0 0
      %1132 = vmatprep.subr.bf16.mxu0 0
      %1133 = vmatpush2.bf16.msra.mxu0 0
      %1134 = vmatprep.subr.bf16.mxu0 0
      %1135 = vmatpush2.bf16.msra.mxu0 0
      %1136 = vmatprep.subr.bf16.mxu0 0
      %1137 = vmatpush2.bf16.msra.mxu0 0
      %1138 = vmatprep.subr.bf16.mxu0 0
      %1139 = vmatpush2.bf16.msra.mxu0 0
      %1140 = vmatprep.subr.bf16.mxu0 0
      %1141 = vmatpush2.bf16.msra.mxu0 0
      %1142 = vmatprep.subr.bf16.mxu0 0
      %1143 = vmatpush2.bf16.msra.mxu0 0
      %1144 = vmatprep.subr.bf16.mxu0 0
      %1145 = vmatpush2.bf16.msra.mxu0 0
      %1146 = vmatprep.mubr.bf16.mxu0 0
      %1147 = vmatmul.mubr.bf16.gmra.mxu0 %v1064
      %v1148 = vpop.f32.mrf.mxu0
      %v1149 = vadd.f32 0.0, %v1148
      %v1150 = vpop.f32.mrf.mxu0
      %v1151 = vpop.f32.mrf.mxu0
      %v1152 = vadd.f32 0.0, %v1151
      %v1153 = vpop.f32.mrf.mxu0
      %1154 = vdwg.mxu0
      %v1155 = vadd.f32 %v933, %v1149
      %v1156 = vadd.f32 %v934, %v1152
      %s1157 = scalar_lea.vmem %s165, 4
      %v1158 = vld [vmem:[%s1157] sm:$0x3]
      %v1159 = vld [vmem:[%s1157 + $0x4] sm:$0x3]
      %v1160 = vld [vmem:[%s1157 + $0x8] sm:$0x3]
      %v1161 = vld [vmem:[%s1157 + $0xc] sm:$0x3]
      %s1162 = scalar_lea.vmem %s1, 384
      %v1163 = vld [vmem:[%s1162] sm:$0xf]
      %v1164 = vld [vmem:[%s1162 + $0x4] sm:$0xf]
      %v1165 = vld [vmem:[%s1162 + $0x8] sm:$0xf]
      %v1166 = vld [vmem:[%s1162 + $0xc] sm:$0xf]
      %v1167 = vld [vmem:[%s1162 + $0x10] sm:$0xf]
      %v1168 = vld [vmem:[%s1162 + $0x14] sm:$0xf]
      %v1169 = vld [vmem:[%s1162 + $0x18] sm:$0xf]
      %v1170 = vld [vmem:[%s1162 + $0x1c] sm:$0xf]
      %v1171 = vld [vmem:[%s1162 + $0x20] sm:$0xf]
      %v1172 = vld [vmem:[%s1162 + $0x24] sm:$0xf]
      %v1173 = vld [vmem:[%s1162 + $0x28] sm:$0xf]
      %v1174 = vld [vmem:[%s1162 + $0x2c] sm:$0xf]
      %v1175 = vld [vmem:[%s1162 + $0x30] sm:$0xf]
      %v1176 = vld [vmem:[%s1162 + $0x34] sm:$0xf]
      %v1177 = vld [vmem:[%s1162 + $0x38] sm:$0xf]
      %v1178 = vld [vmem:[%s1162 + $0x3c] sm:$0xf]
      %v1183 = vcombine.low %v1158, %v1159
      %v1184 = vcombine.low %v1160, %v1161
      %v1186 = vunpack.c.l.s4 1983009808
      %v1187 = vunpack.c.0.s8 %v1186
      %v1188 = vlaneseq
      %v1189 = vshrl.u32 %v1188, 7
      %v1190 = vsub.s32 %v1187, %v1189
      %v1191 = vrot.slane %v1183, %v1190
      %v1193 = vunpack.c.l.s4 1983009808
      %v1194 = vunpack.c.0.s8 %v1193
      %v1195 = vlaneseq
      %v1196 = vshrl.u32 %v1195, 7
      %v1197 = vsub.s32 %v1194, %v1196
      %v1198 = vrot.slane %v1184, %v1197
      %v1199 = vcombine.low %v1191, %v1198
      %v1217 = vunpack.c.l.b16 %v1163
      %v1218 = vunpack.c.l.b16 %v1164
      %v1219 = vunpack.c.l.b16 %v1165
      %v1220 = vunpack.c.l.b16 %v1166
      %v1221 = vunpack.c.l.b16 %v1167
      %v1222 = vunpack.c.l.b16 %v1168
      %v1223 = vunpack.c.l.b16 %v1169
      %v1224 = vunpack.c.l.b16 %v1170
      %v1225 = vunpack.c.l.b16 %v1171
      %v1226 = vunpack.c.l.b16 %v1172
      %v1227 = vunpack.c.l.b16 %v1173
      %v1228 = vunpack.c.l.b16 %v1174
      %v1229 = vunpack.c.l.b16 %v1175
      %v1230 = vunpack.c.l.b16 %v1176
      %v1231 = vunpack.c.l.b16 %v1177
      %v1232 = vunpack.c.l.b16 %v1178
      %v1233 = vpack.c.b16 %v1218, %v1217
      %v1234 = vpack.c.b16 %v1220, %v1219
      %v1235 = vpack.c.b16 %v1222, %v1221
      %v1236 = vpack.c.b16 %v1224, %v1223
      %v1237 = vpack.c.b16 %v1226, %v1225
      %v1238 = vpack.c.b16 %v1228, %v1227
      %v1239 = vpack.c.b16 %v1230, %v1229
      %v1240 = vpack.c.b16 %v1232, %v1231
      %1249 = vmatprep.subr.bf16.mxu0 0
      %1250 = vmatpush1.bf16.msra.mxu0 %v1240
      %1251 = vmatprep.subr.bf16.mxu0 0
      %1252 = vmatpush1.bf16.msra.mxu0 %v1239
      %1253 = vmatprep.subr.bf16.mxu0 0
      %1254 = vmatpush1.bf16.msra.mxu0 %v1238
      %1255 = vmatprep.subr.bf16.mxu0 0
      %1256 = vmatpush1.bf16.msra.mxu0 %v1237
      %1257 = vmatprep.subr.bf16.mxu0 0
      %1258 = vmatpush1.bf16.msra.mxu0 %v1236
      %1259 = vmatprep.subr.bf16.mxu0 0
      %1260 = vmatpush1.bf16.msra.mxu0 %v1235
      %1261 = vmatprep.subr.bf16.mxu0 0
      %1262 = vmatpush1.bf16.msra.mxu0 %v1234
      %1263 = vmatprep.subr.bf16.mxu0 0
      %1264 = vmatpush1.bf16.msra.mxu0 %v1233
      %1265 = vmatprep.subr.bf16.mxu0 0
      %1266 = vmatpush2.bf16.msra.mxu0 0
      %1267 = vmatprep.subr.bf16.mxu0 0
      %1268 = vmatpush2.bf16.msra.mxu0 0
      %1269 = vmatprep.subr.bf16.mxu0 0
      %1270 = vmatpush2.bf16.msra.mxu0 0
      %1271 = vmatprep.subr.bf16.mxu0 0
      %1272 = vmatpush2.bf16.msra.mxu0 0
      %1273 = vmatprep.subr.bf16.mxu0 0
      %1274 = vmatpush2.bf16.msra.mxu0 0
      %1275 = vmatprep.subr.bf16.mxu0 0
      %1276 = vmatpush2.bf16.msra.mxu0 0
      %1277 = vmatprep.subr.bf16.mxu0 0
      %1278 = vmatpush2.bf16.msra.mxu0 0
      %1279 = vmatprep.subr.bf16.mxu0 0
      %1280 = vmatpush2.bf16.msra.mxu0 0
      %1281 = vmatprep.mubr.bf16.mxu0 0
      %1282 = vmatmul.mubr.bf16.gmra.mxu0 %v1199
      %v1283 = vpop.f32.mrf.mxu0
      %v1284 = vadd.f32 0.0, %v1283
      %v1285 = vpop.f32.mrf.mxu0
      %v1286 = vpop.f32.mrf.mxu0
      %v1287 = vadd.f32 0.0, %v1286
      %v1288 = vpop.f32.mrf.mxu0
      %1289 = vdwg.mxu0
      %v1290 = vadd.f32 %v1155, %v1284
      %v1291 = vadd.f32 %v1156, %v1287
      %s1292 = scalar_lea.vmem %s165, 24
      %v1293 = vld [vmem:[%s1292] sm:$0x3]
      %v1294 = vld [vmem:[%s1292 + $0x4] sm:$0x3]
      %v1295 = vld [vmem:[%s1292 + $0x8] sm:$0x3]
      %v1296 = vld [vmem:[%s1292 + $0xc] sm:$0x3]
      %s1297 = scalar_lea.vmem %s1, 448
      %v1298 = vld [vmem:[%s1297] sm:$0xf]
      %v1299 = vld [vmem:[%s1297 + $0x4] sm:$0xf]
      %v1300 = vld [vmem:[%s1297 + $0x8] sm:$0xf]
      %v1301 = vld [vmem:[%s1297 + $0xc] sm:$0xf]
      %v1302 = vld [vmem:[%s1297 + $0x10] sm:$0xf]
      %v1303 = vld [vmem:[%s1297 + $0x14] sm:$0xf]
      %v1304 = vld [vmem:[%s1297 + $0x18] sm:$0xf]
      %v1305 = vld [vmem:[%s1297 + $0x1c] sm:$0xf]
      %v1306 = vld [vmem:[%s1297 + $0x20] sm:$0xf]
      %v1307 = vld [vmem:[%s1297 + $0x24] sm:$0xf]
      %v1308 = vld [vmem:[%s1297 + $0x28] sm:$0xf]
      %v1309 = vld [vmem:[%s1297 + $0x2c] sm:$0xf]
      %v1310 = vld [vmem:[%s1297 + $0x30] sm:$0xf]
      %v1311 = vld [vmem:[%s1297 + $0x34] sm:$0xf]
      %v1312 = vld [vmem:[%s1297 + $0x38] sm:$0xf]
      %v1313 = vld [vmem:[%s1297 + $0x3c] sm:$0xf]
      %v1318 = vcombine.low %v1293, %v1294
      %v1319 = vcombine.low %v1295, %v1296
      %v1321 = vunpack.c.l.s4 1983009808
      %v1322 = vunpack.c.0.s8 %v1321
      %v1323 = vlaneseq
      %v1324 = vshrl.u32 %v1323, 7
      %v1325 = vsub.s32 %v1322, %v1324
      %v1326 = vrot.slane %v1318, %v1325
      %v1328 = vunpack.c.l.s4 1983009808
      %v1329 = vunpack.c.0.s8 %v1328
      %v1330 = vlaneseq
      %v1331 = vshrl.u32 %v1330, 7
      %v1332 = vsub.s32 %v1329, %v1331
      %v1333 = vrot.slane %v1319, %v1332
      %v1334 = vcombine.low %v1326, %v1333
      %v1352 = vunpack.c.l.b16 %v1298
      %v1353 = vunpack.c.l.b16 %v1299
      %v1354 = vunpack.c.l.b16 %v1300
      %v1355 = vunpack.c.l.b16 %v1301
      %v1356 = vunpack.c.l.b16 %v1302
      %v1357 = vunpack.c.l.b16 %v1303
      %v1358 = vunpack.c.l.b16 %v1304
      %v1359 = vunpack.c.l.b16 %v1305
      %v1360 = vunpack.c.l.b16 %v1306
      %v1361 = vunpack.c.l.b16 %v1307
      %v1362 = vunpack.c.l.b16 %v1308
      %v1363 = vunpack.c.l.b16 %v1309
      %v1364 = vunpack.c.l.b16 %v1310
      %v1365 = vunpack.c.l.b16 %v1311
      %v1366 = vunpack.c.l.b16 %v1312
      %v1367 = vunpack.c.l.b16 %v1313
      %v1368 = vpack.c.b16 %v1353, %v1352
      %v1369 = vpack.c.b16 %v1355, %v1354
      %v1370 = vpack.c.b16 %v1357, %v1356
      %v1371 = vpack.c.b16 %v1359, %v1358
      %v1372 = vpack.c.b16 %v1361, %v1360
      %v1373 = vpack.c.b16 %v1363, %v1362
      %v1374 = vpack.c.b16 %v1365, %v1364
      %v1375 = vpack.c.b16 %v1367, %v1366
      %1384 = vmatprep.subr.bf16.mxu0 0
      %1385 = vmatpush1.bf16.msra.mxu0 %v1375
      %1386 = vmatprep.subr.bf16.mxu0 0
      %1387 = vmatpush1.bf16.msra.mxu0 %v1374
      %1388 = vmatprep.subr.bf16.mxu0 0
      %1389 = vmatpush1.bf16.msra.mxu0 %v1373
      %1390 = vmatprep.subr.bf16.mxu0 0
      %1391 = vmatpush1.bf16.msra.mxu0 %v1372
      %1392 = vmatprep.subr.bf16.mxu0 0
      %1393 = vmatpush1.bf16.msra.mxu0 %v1371
      %1394 = vmatprep.subr.bf16.mxu0 0
      %1395 = vmatpush1.bf16.msra.mxu0 %v1370
      %1396 = vmatprep.subr.bf16.mxu0 0
      %1397 = vmatpush1.bf16.msra.mxu0 %v1369
      %1398 = vmatprep.subr.bf16.mxu0 0
      %1399 = vmatpush1.bf16.msra.mxu0 %v1368
      %1400 = vmatprep.subr.bf16.mxu0 0
      %1401 = vmatpush2.bf16.msra.mxu0 0
      %1402 = vmatprep.subr.bf16.mxu0 0
      %1403 = vmatpush2.bf16.msra.mxu0 0
      %1404 = vmatprep.subr.bf16.mxu0 0
      %1405 = vmatpush2.bf16.msra.mxu0 0
      %1406 = vmatprep.subr.bf16.mxu0 0
      %1407 = vmatpush2.bf16.msra.mxu0 0
      %1408 = vmatprep.subr.bf16.mxu0 0
      %1409 = vmatpush2.bf16.msra.mxu0 0
      %1410 = vmatprep.subr.bf16.mxu0 0
      %1411 = vmatpush2.bf16.msra.mxu0 0
      %1412 = vmatprep.subr.bf16.mxu0 0
      %1413 = vmatpush2.bf16.msra.mxu0 0
      %1414 = vmatprep.subr.bf16.mxu0 0
      %1415 = vmatpush2.bf16.msra.mxu0 0
      %1416 = vmatprep.mubr.bf16.mxu0 0
      %1417 = vmatmul.mubr.bf16.gmra.mxu0 %v1334
      %v1418 = vpop.f32.mrf.mxu0
      %v1419 = vadd.f32 0.0, %v1418
      %v1420 = vpop.f32.mrf.mxu0
      %v1421 = vpop.f32.mrf.mxu0
      %v1422 = vadd.f32 0.0, %v1421
      %v1423 = vpop.f32.mrf.mxu0
      %1424 = vdwg.mxu0
      %v1425 = vadd.f32 %v1290, %v1419
      %v1426 = vadd.f32 %v1291, %v1422
      %v1427 = vld [vmem:[%s1157] sm:$0x7]
      %v1428 = vld [vmem:[%s1157 + $0x4] sm:$0x7]
      %v1429 = vld [vmem:[%s1157 + $0x8] sm:$0x7]
      %v1430 = vld [vmem:[%s1157 + $0xc] sm:$0x7]
      %v1436 = vunpack.c.l.s4 1983009808
      %v1437 = vunpack.c.0.s8 %v1436
      %v1438 = vlaneseq
      %v1439 = vshrl.u32 %v1438, 7
      %v1440 = vsub.s32 %v1437, %v1439
      %v1441 = vrot.slane %v1427, %v1440
      %v1442 = vcombine.high %v1441, %v1441
      %v1444 = vunpack.c.l.s4 1983009808
      %v1445 = vunpack.c.0.s8 %v1444
      %v1446 = vlaneseq
      %v1447 = vshrl.u32 %v1446, 7
      %v1448 = vsub.s32 %v1445, %v1447
      %v1449 = vrot.slane %v1428, %v1448
      %v1450 = vcombine.high %v1449, %v1449
      %v1452 = vunpack.c.l.s4 1983009808
      %v1453 = vunpack.c.0.s8 %v1452
      %v1454 = vlaneseq
      %v1455 = vshrl.u32 %v1454, 7
      %v1456 = vsub.s32 %v1453, %v1455
      %v1457 = vrot.slane %v1429, %v1456
      %v1458 = vcombine.high %v1457, %v1457
      %v1460 = vunpack.c.l.s4 1983009808
      %v1461 = vunpack.c.0.s8 %v1460
      %v1462 = vlaneseq
      %v1463 = vshrl.u32 %v1462, 7
      %v1464 = vsub.s32 %v1461, %v1463
      %v1465 = vrot.slane %v1430, %v1464
      %v1466 = vcombine.high %v1465, %v1465
      %v1468 = vshrl.u32 %v1441, 16
      %v1470 = vrot.slane %v1468, 6
      %v1471 = vshll.u32 %v1441, 16
      %v1473 = vrot.slane %v1471, 7
      %v1474 = vor.u32 %v1470, %v1473
      %v1475 = vrot.slane %v1474, 2
      %v1477 = vshll.u32 %v1442, 16
      %v1479 = vrot.slane %v1477, 7
      %v1480 = vsel %vm482, %v1475, %v1479
      %v1482 = vshrl.u32 %v1449, 16
      %v1484 = vrot.slane %v1482, 6
      %v1485 = vshll.u32 %v1449, 16
      %v1487 = vrot.slane %v1485, 7
      %v1488 = vor.u32 %v1484, %v1487
      %v1489 = vrot.slane %v1488, 2
      %v1491 = vshll.u32 %v1450, 16
      %v1493 = vrot.slane %v1491, 7
      %v1494 = vsel %vm482, %v1489, %v1493
      %v1496 = vshrl.u32 %v1457, 16
      %v1498 = vrot.slane %v1496, 6
      %v1499 = vshll.u32 %v1457, 16
      %v1501 = vrot.slane %v1499, 7
      %v1502 = vor.u32 %v1498, %v1501
      %v1503 = vrot.slane %v1502, 2
      %v1505 = vshll.u32 %v1458, 16
      %v1507 = vrot.slane %v1505, 7
      %v1508 = vsel %vm482, %v1503, %v1507
      %v1510 = vshrl.u32 %v1465, 16
      %v1512 = vrot.slane %v1510, 6
      %v1513 = vshll.u32 %v1465, 16
      %v1515 = vrot.slane %v1513, 7
      %v1516 = vor.u32 %v1512, %v1515
      %v1517 = vrot.slane %v1516, 2
      %v1519 = vshll.u32 %v1466, 16
      %v1521 = vrot.slane %v1519, 7
      %v1522 = vsel %vm482, %v1517, %v1521
      %s1523 = scalar_lea.vmem %s1, 512
      %v1524 = vld [vmem:[%s1523] sm:$0xf]
      %v1525 = vld [vmem:[%s1523 + $0x4] sm:$0xf]
      %v1526 = vld [vmem:[%s1523 + $0x8] sm:$0xf]
      %v1527 = vld [vmem:[%s1523 + $0xc] sm:$0xf]
      %v1528 = vld [vmem:[%s1523 + $0x10] sm:$0xf]
      %v1529 = vld [vmem:[%s1523 + $0x14] sm:$0xf]
      %v1530 = vld [vmem:[%s1523 + $0x18] sm:$0xf]
      %v1531 = vld [vmem:[%s1523 + $0x1c] sm:$0xf]
      %v1532 = vld [vmem:[%s1523 + $0x20] sm:$0xf]
      %v1533 = vld [vmem:[%s1523 + $0x24] sm:$0xf]
      %v1534 = vld [vmem:[%s1523 + $0x28] sm:$0xf]
      %v1535 = vld [vmem:[%s1523 + $0x2c] sm:$0xf]
      %v1536 = vld [vmem:[%s1523 + $0x30] sm:$0xf]
      %v1537 = vld [vmem:[%s1523 + $0x34] sm:$0xf]
      %v1538 = vld [vmem:[%s1523 + $0x38] sm:$0xf]
      %v1539 = vld [vmem:[%s1523 + $0x3c] sm:$0xf]
      %v1540 = vcombine.low %v1480, %v1494
      %v1541 = vcombine.low %v1508, %v1522
      %v1543 = vunpack.c.l.s4 1983009808
      %v1544 = vunpack.c.0.s8 %v1543
      %v1545 = vlaneseq
      %v1546 = vshrl.u32 %v1545, 7
      %v1547 = vsub.s32 %v1544, %v1546
      %v1548 = vrot.slane %v1540, %v1547
      %v1550 = vunpack.c.l.s4 1983009808
      %v1551 = vunpack.c.0.s8 %v1550
      %v1552 = vlaneseq
      %v1553 = vshrl.u32 %v1552, 7
      %v1554 = vsub.s32 %v1551, %v1553
      %v1555 = vrot.slane %v1541, %v1554
      %v1556 = vcombine.low %v1548, %v1555
      %v1574 = vunpack.c.l.b16 %v1524
      %v1575 = vunpack.c.l.b16 %v1525
      %v1576 = vunpack.c.l.b16 %v1526
      %v1577 = vunpack.c.l.b16 %v1527
      %v1578 = vunpack.c.l.b16 %v1528
      %v1579 = vunpack.c.l.b16 %v1529
      %v1580 = vunpack.c.l.b16 %v1530
      %v1581 = vunpack.c.l.b16 %v1531
      %v1582 = vunpack.c.l.b16 %v1532
      %v1583 = vunpack.c.l.b16 %v1533
      %v1584 = vunpack.c.l.b16 %v1534
      %v1585 = vunpack.c.l.b16 %v1535
      %v1586 = vunpack.c.l.b16 %v1536
      %v1587 = vunpack.c.l.b16 %v1537
      %v1588 = vunpack.c.l.b16 %v1538
      %v1589 = vunpack.c.l.b16 %v1539
      %v1590 = vpack.c.b16 %v1575, %v1574
      %v1591 = vpack.c.b16 %v1577, %v1576
      %v1592 = vpack.c.b16 %v1579, %v1578
      %v1593 = vpack.c.b16 %v1581, %v1580
      %v1594 = vpack.c.b16 %v1583, %v1582
      %v1595 = vpack.c.b16 %v1585, %v1584
      %v1596 = vpack.c.b16 %v1587, %v1586
      %v1597 = vpack.c.b16 %v1589, %v1588
      %1606 = vmatprep.subr.bf16.mxu0 0
      %1607 = vmatpush1.bf16.msra.mxu0 %v1597
      %1608 = vmatprep.subr.bf16.mxu0 0
      %1609 = vmatpush1.bf16.msra.mxu0 %v1596
      %1610 = vmatprep.subr.bf16.mxu0 0
      %1611 = vmatpush1.bf16.msra.mxu0 %v1595
      %1612 = vmatprep.subr.bf16.mxu0 0
      %1613 = vmatpush1.bf16.msra.mxu0 %v1594
      %1614 = vmatprep.subr.bf16.mxu0 0
      %1615 = vmatpush1.bf16.msra.mxu0 %v1593
      %1616 = vmatprep.subr.bf16.mxu0 0
      %1617 = vmatpush1.bf16.msra.mxu0 %v1592
      %1618 = vmatprep.subr.bf16.mxu0 0
      %1619 = vmatpush1.bf16.msra.mxu0 %v1591
      %1620 = vmatprep.subr.bf16.mxu0 0
      %1621 = vmatpush1.bf16.msra.mxu0 %v1590
      %1622 = vmatprep.subr.bf16.mxu0 0
      %1623 = vmatpush2.bf16.msra.mxu0 0
      %1624 = vmatprep.subr.bf16.mxu0 0
      %1625 = vmatpush2.bf16.msra.mxu0 0
      %1626 = vmatprep.subr.bf16.mxu0 0
      %1627 = vmatpush2.bf16.msra.mxu0 0
      %1628 = vmatprep.subr.bf16.mxu0 0
      %1629 = vmatpush2.bf16.msra.mxu0 0
      %1630 = vmatprep.subr.bf16.mxu0 0
      %1631 = vmatpush2.bf16.msra.mxu0 0
      %1632 = vmatprep.subr.bf16.mxu0 0
      %1633 = vmatpush2.bf16.msra.mxu0 0
      %1634 = vmatprep.subr.bf16.mxu0 0
      %1635 = vmatpush2.bf16.msra.mxu0 0
      %1636 = vmatprep.subr.bf16.mxu0 0
      %1637 = vmatpush2.bf16.msra.mxu0 0
      %1638 = vmatprep.mubr.bf16.mxu0 0
      %1639 = vmatmul.mubr.bf16.gmra.mxu0 %v1556
      %v1640 = vpop.f32.mrf.mxu0
      %v1641 = vadd.f32 0.0, %v1640
      %v1642 = vpop.f32.mrf.mxu0
      %v1643 = vpop.f32.mrf.mxu0
      %v1644 = vadd.f32 0.0, %v1643
      %v1645 = vpop.f32.mrf.mxu0
      %1646 = vdwg.mxu0
      %v1647 = vadd.f32 %v1425, %v1641
      %v1648 = vadd.f32 %v1426, %v1644
      %v1649 = vld [vmem:[%s2] sm:$0x1]
      %v1651 = vlaneseq
      %v1652 = vshrl.u32 %v1651, 7
      %v1653 = vsub.s32 0, %v1652
      %v1654 = vrot.slane %v1649, %v1653
      %v1656 = vadd.f32 %v1647, %v1654
      %v1657 = vadd.f32 %v1648, %v1654
      %v1658 = vmax.f32 %v1656, 0.0
      %v1659 = vmax.f32 %v1657, 0.0
      %v1662 = vcombine.high %v1658, %v1658
      %v1663 = vcombine.high %v1659, %v1659
      %v1666 = vpack.c.bf16 %v1658, %v1658
      %v1667 = vpack.c.bf16 %v1662, %v1662
      %v1668 = vpack.c.bf16 %v1659, %v1659
      %v1669 = vpack.c.bf16 %v1663, %v1663
      %1670 = vst [vmem:[%s170] sm:$0x3] %v1666
      %1671 = vst [vmem:[%s170 + $0x2] sm:$0x3] %v1667
      %1672 = vst [vmem:[%s170 + $0x4] sm:$0x3] %v1668
      %1673 = vst [vmem:[%s170 + $0x6] sm:$0x3] %v1669
      %p1674 = scmp.lt.s32.totalorder %s14, 1
      %s1675 = scalar_select %p1674, %s14, 1
      %s1676 = smul.addr %s1675, 4
      %s1677 = smul.addr %s1676, 2
      %s1678 = scalar_lea.vmem %s3, %s1677
      // Predicated region
      $region33: #{bottleneck_forward.5} parent=31 // pred_check
        %p1679 = pneg %p100
      $region34: #{bottleneck_forward.5} parent=31 // pred_check_branch
        %1681 = sbr.rel (%p1679) target = $region36
      $region35: #{bottleneck_forward.5} parent=31 // pred_region
        _
      $region36: #{bottleneck_forward.5} parent=31 // pred_fallthru
        _
    $region32: #{bottleneck_forward.5} parent=5 // pred_fallthru
      _
    %p1682 = scmp.le.s32.totalorder 2, %s9
    // Predicated region
    $region37: #{bottleneck_forward.5} parent=5 // pred_check
      %p1683 = pneg %p1682
    $region38: #{bottleneck_forward.5} parent=5 // pred_check_branch
      %1685 = sbr.rel (%p1683) target = $region40
    $region39: #{bottleneck_forward.5} parent=5 // pred_region
      %s1686 = ssub.s32 %s9, 2
      // Predicated region
      $region41: #{bottleneck_forward.5} parent=39 // pred_check
        %p1687 = pneg %p106
      $region42: #{bottleneck_forward.5} parent=39 // pred_check_branch
        %1689 = sbr.rel (%p1687) target = $region44
      $region43: #{bottleneck_forward.5} parent=39 // pred_region
        %p1690 = scmp.lt.s32.totalorder %s15, 1
        %s1691 = scalar_select %p1690, %s15, 1
        %s1692 = smul.addr %s1691, 4
        %s1693 = smul.addr %s1692, 2
        %s1694 = scalar_lea.vmem %s3, %s1693
      $region44: #{bottleneck_forward.5} parent=39 // pred_fallthru
        _
    $region40: #{bottleneck_forward.5} parent=5 // pred_fallthru
      _
  $region6: #{bottleneck_forward.5} parent=0 // loop_footer
    %s13 = sadd.s32 1, %s9
  $region7: #{bottleneck_forward.5} parent=0 // loop_footer_branch
    %8 = sbr.rel target = $region3
  $region8: #{bottleneck_forward.5} parent=0 // loop_exit
    _

</llo_original>
